<compile_context>
chip_gen: v7x
topology: tpu7x:2x2x1
jax: 0.10.0
libtpu: 0.0.40
codegen_flags: <defaults>
</compile_context>

<pallas_src>
import math
import jax
import jax.numpy as jnp
from jax import lax
from jax.experimental import pallas as pl
from jax.experimental.pallas import tpu as pltpu


# ----------------------------------------------------------------------------
# Pallas kernel: both directions of one LSTM layer.
#
# Grid = (2, S // T): axis 0 = direction ("parallel"), axis 1 = time chunk
# ("arbitrary", sequential).  Inputs are pre-computed gate pre-activations
# (x @ W_ih^T + b) so the per-step work is only h @ W_hh^T + nonlinearities.
# ----------------------------------------------------------------------------
def _bidir_lstm_kernel(pg_ref, whh_ref, h0_ref, c0_ref,
                       hseq_ref, cfin_ref,
                       h_scr, c_scr):
    d = pl.program_id(0)              # direction: 0 = forward, 1 = backward
    c = pl.program_id(1)              # chunk index in grid order
    n_chunks = pl.num_programs(1)

    T = pg_ref.shape[0]               # timesteps per chunk (static)
    H = h_scr.shape[-1]

    @pl.when(c == 0)
    def _():
        h_scr[...] = h0_ref[...].astype(jnp.float32)
        c_scr[...] = c0_ref[...].astype(jnp.float32)

    reverse = d == 1                  # backward direction walks the chunk in reverse

    def step(j, carry):
        t = jnp.where(reverse, T - 1 - j, j)          # chunk-local timestep
        pre = pg_ref[t]                               # (B, 4H) f32 pre-gates
        # Recurrent projection: bf16 operands, f32 accumulation on the MXU.
        gates = pre + jnp.dot(h_scr[...].astype(jnp.bfloat16), whh_ref[...],
                              preferred_element_type=jnp.float32)
        # Gate order [i, f, g, o] (PyTorch).  NOTE: for H < 128 these slices
        # are sub-128-lane (fine for the small demo; lane-dense for H >= 128).
        i = jax.nn.sigmoid(gates[:, 0 * H:1 * H])
        f = jax.nn.sigmoid(gates[:, 1 * H:2 * H])
        g = jnp.tanh(gates[:, 2 * H:3 * H])
        o = jax.nn.sigmoid(gates[:, 3 * H:4 * H])

        c_new = f * c_scr[...] + i * g                # f32 cell update
        h_new = o * jnp.tanh(c_new)

        h_scr[...] = h_new
        c_scr[...] = c_new
        hseq_ref[t] = h_new.astype(hseq_ref.dtype)    # original-time position
        return carry

    lax.fori_loop(0, T, step, 0, unroll=True)

    @pl.when(c == n_chunks - 1)
    def _():
        cfin_ref[...] = c_scr[...].astype(cfin_ref.dtype)


def lstm_bidir_layer_pallas(pre_gates_fwd, pre_gates_bwd, w_hh_fwd, w_hh_bwd,
                            h0, c0, time_chunk=None):
    """Run both directions of one LSTM layer.

    pre_gates_*: (S, B, 4H) f32 -- x @ W_ih^T + (b_ih + b_hh), original time order
    w_hh_*:      (4H, H) PyTorch layout
    h0, c0:      (2, B, H) initial states, [forward, backward]
    Returns hseq (2, S, B, H) in original time order and cfin (2, B, H).
    """
    S, B, G = pre_gates_fwd.shape
    H = G // 4

    if time_chunk is None:
        T = 1
        for cand in (32, 16, 8, 4, 2, 1):
            if S % cand == 0:
                T = cand
                break
    else:
        T = time_chunk
    n_chunks = S // T

    pg = jnp.stack([pre_gates_fwd, pre_gates_bwd], axis=0).astype(jnp.float32)
    # (In, 4H)-style layout for row-major matmul on MXU; bf16 weights (half the
    # VMEM residency -> fits resident under v7x's 64 MiB for production H).
    whh = jnp.stack([jnp.asarray(w_hh_fwd, jnp.float32).T,
                     jnp.asarray(w_hh_bwd, jnp.float32).T],
                    axis=0).astype(jnp.bfloat16)              # (2, H, 4H)

    def time_idx(d, c):
        # forward: chunk c ; backward: chunk n_chunks-1-c (in-chunk reversal is
        # handled inside the kernel) -- avoids any [::-1] HBM copies.
        return d * (n_chunks - 1) + (1 - 2 * d) * c

    grid_spec = pltpu.PrefetchScalarGridSpec(
        num_scalar_prefetch=0,
        grid=(2, n_chunks),
        in_specs=[
            pl.BlockSpec((None, T, B, 4 * H),
                         lambda d, c: (d, time_idx(d, c), 0, 0)),   # pre-gates
            pl.BlockSpec((None, H, 4 * H), lambda d, c: (d, 0, 0)),  # W_hh^T
            pl.BlockSpec((None, B, H), lambda d, c: (d, 0, 0)),      # h0
            pl.BlockSpec((None, B, H), lambda d, c: (d, 0, 0)),      # c0
        ],
        out_specs=[
            pl.BlockSpec((None, T, B, H),
                         lambda d, c: (d, time_idx(d, c), 0, 0)),    # h sequence
            pl.BlockSpec((None, B, H), lambda d, c: (d, 0, 0)),      # final c
        ],
        scratch_shapes=[
            pltpu.VMEM((B, H), jnp.float32),   # h carry (per-core on megacore)
            pltpu.VMEM((B, H), jnp.float32),   # c carry
        ],
    )

    hseq, cfin = pl.pallas_call(
        _bidir_lstm_kernel,
        out_shape=(
            jax.ShapeDtypeStruct((2, S, B, H), jnp.float32),
            jax.ShapeDtypeStruct((2, B, H), jnp.float32),
        ),
        grid_spec=grid_spec,
        compiler_params=pltpu.CompilerParams(
            # direction axis independent -> 2-TC split on v7x; time is serial.
            dimension_semantics=("parallel", "arbitrary"),
            # Explicit VMEM budget; raise toward ~96 MiB on v5e/v6e (and keep
            # <= ~48 MiB on v7x) for production hidden sizes with resident weights.
            vmem_limit_bytes=32 * 1024 * 1024),
    )(pg, whh, jnp.asarray(h0, jnp.float32), jnp.asarray(c0, jnp.float32))
    return hseq, cfin


# ----------------------------------------------------------------------------
# Parameter init (deterministic, mirrors nn.Embedding + nn.LSTM shapes)
# ----------------------------------------------------------------------------
def init_params(key, input_instances_num, hidden, num_layers=2, num_dirs=2):
    params = {}
    bound = 1.0 / math.sqrt(hidden)
    key, ek = jax.random.split(key)
    params["embedding"] = jax.random.normal(
        ek, (input_instances_num, hidden), jnp.float32)
    for layer in range(num_layers):
        in_size = hidden if layer == 0 else hidden * num_dirs
        for d in range(num_dirs):
            sfx = f"l{layer}" + ("_reverse" if d == 1 else "")
            key, k1, k2, k3, k4 = jax.random.split(key, 5)
            params[f"w_ih_{sfx}"] = jax.random.uniform(
                k1, (4 * hidden, in_size), jnp.float32, -bound, bound)
            params[f"w_hh_{sfx}"] = jax.random.uniform(
                k2, (4 * hidden, hidden), jnp.float32, -bound, bound)
            params[f"b_ih_{sfx}"] = jax.random.uniform(
                k3, (4 * hidden,), jnp.float32, -bound, bound)
            params[f"b_hh_{sfx}"] = jax.random.uniform(
                k4, (4 * hidden,), jnp.float32, -bound, bound)
    return params


# ----------------------------------------------------------------------------
# Forward pass: embedding gather + hoisted input projections in JAX glue,
# the recurrence in the Pallas kernel.  Semantics match the PyTorch module
# (bidirectional, outputs[:, :, :H] + outputs[:, :, H:]).
# ----------------------------------------------------------------------------
def features_chain_encoder_forward(params, input_sequences, hidden,
                                   first_state=None, num_layers=2):
    S, B = input_sequences.shape
    H = hidden
    num_dirs = 2

    # Embedding lookup (gather) kept in plain JAX glue.
    emb = jnp.take(params["embedding"], input_sequences, axis=0)   # (S, B, H)

    if first_state is None:
        h0_all = jnp.zeros((num_layers * num_dirs, B, H), jnp.float32)
        c0_all = jnp.zeros_like(h0_all)
    else:
        h0_all, c0_all = first_state

    h_n, c_n = [], []
    x_fwd, x_bwd = emb, None
    for layer in range(num_layers):
        sfx_f = f"l{layer}"
        sfx_b = f"l{layer}_reverse"
        wih_f = params[f"w_ih_{sfx_f}"]
        wih_b = params[f"w_ih_{sfx_b}"]
        b_f = params[f"b_ih_{sfx_f}"] + params[f"b_hh_{sfx_f}"]
        b_b = params[f"b_ih_{sfx_b}"] + params[f"b_hh_{sfx_b}"]

        # Hoisted input projection over ALL timesteps (one big matmul per term).
        if x_bwd is None:
            pg_f = jnp.einsum("sbi,gi->sbg", x_fwd, wih_f) + b_f
            pg_b = jnp.einsum("sbi,gi->sbg", x_fwd, wih_b) + b_b
        else:
            # Layer >= 1: input is conceptually concat([h_fwd, h_bwd], -1);
            # skip the concatenate by splitting W_ih's columns in half.
            pg_f = (jnp.einsum("sbi,gi->sbg", x_fwd, wih_f[:, :H])
                    + jnp.einsum("sbi,gi->sbg", x_bwd, wih_f[:, H:]) + b_f)
            pg_b = (jnp.einsum("sbi,gi->sbg", x_fwd, wih_b[:, :H])
                    + jnp.einsum("sbi,gi->sbg", x_bwd, wih_b[:, H:]) + b_b)

        idx_f = layer * num_dirs
        idx_b = idx_f + 1
        h0 = jnp.stack([h0_all[idx_f], h0_all[idx_b]], axis=0)
        c0 = jnp.stack([c0_all[idx_f], c0_all[idx_b]], axis=0)

        hseq, cfin = lstm_bidir_layer_pallas(
            pg_f, pg_b,
            params[f"w_hh_{sfx_f}"], params[f"w_hh_{sfx_b}"],
            h0, c0)

        x_fwd = hseq[0]                   # (S, B, H) forward outputs
        x_bwd = hseq[1]                   # (S, B, H) backward outputs (time order)
        # Final h taken from the sequence (no extra kernel outputs needed).
        h_n.extend([hseq[0, S - 1], hseq[1, 0]])
        c_n.extend([cfin[0], cfin[1]])
        # TODO(synk): inter-layer dropout (rnn_dropout > 0) not implemented;
        # module default is dropout=0.

    outputs = x_fwd + x_bwd               # == outputs[:, :, :H] + outputs[:, :, H:]
    state = (jnp.stack(h_n, axis=0), jnp.stack(c_n, axis=0))
    return outputs, state


# ----------------------------------------------------------------------------
# Pure-JAX reference for validation
# ----------------------------------------------------------------------------
def _lstm_direction_ref(x, w_ih, w_hh, b_ih, b_hh, h0, c0):
    H = w_hh.shape[1]

    def step(carry, x_t):
        h, c = carry
        gates = (jnp.dot(x_t, w_ih.T, precision=lax.Precision.HIGHEST)
                 + jnp.dot(h, w_hh.T, precision=lax.Precision.HIGHEST)
                 + b_ih + b_hh)
        i = jax.nn.sigmoid(gates[:, 0 * H:1 * H])
        f = jax.nn.sigmoid(gates[:, 1 * H:2 * H])
        g = jnp.tanh(gates[:, 2 * H:3 * H])
        o = jax.nn.sigmoid(gates[:, 3 * H:4 * H])
        c = f * c + i * g
        h = o * jnp.tanh(c)
        return (h, c), h

    (hT, cT), hs = lax.scan(step, (h0, c0), x)
    return hs, hT, cT


def forward_ref(params, input_sequences, hidden, num_layers=2, num_dirs=2):
    S, B = input_sequences.shape
    x = jnp.take(params["embedding"], input_sequences, axis=0)
    h0 = jnp.zeros((num_layers * num_dirs, B, hidden), jnp.float32)
    c0 = jnp.zeros_like(h0)
    h_n, c_n = [], []
    for layer in range(num_layers):
        dir_outs = []
        for d in range(num_dirs):
            sfx = f"l{layer}" + ("_reverse" if d == 1 else "")
            idx = layer * num_dirs + d
            x_dir = x if d == 0 else x[::-1]
            hs, hT, cT = _lstm_direction_ref(
                x_dir, params[f"w_ih_{sfx}"], params[f"w_hh_{sfx}"],
                params[f"b_ih_{sfx}"], params[f"b_hh_{sfx}"],
                h0[idx], c0[idx])
            if d == 1:
                hs = hs[::-1]
            dir_outs.append(hs)
            h_n.append(hT)
            c_n.append(cT)
        x = jnp.concatenate(dir_outs, axis=-1)
    outputs = x[:, :, :hidden] + x[:, :, hidden:]
    return outputs, (jnp.stack(h_n), jnp.stack(c_n))


if __name__ == "__main__":
    SEQ, BATCH, HIDDEN = 8, 2, 32
    INSTANCES = 10

    key = jax.random.PRNGKey(0)
    params = init_params(key, INSTANCES, HIDDEN)

    idx_key = jax.random.fold_in(key, 123)
    input_sequences = jax.random.randint(
        idx_key, (SEQ, BATCH), 0, INSTANCES, dtype=jnp.int32)

    outputs, (h_n, c_n) = features_chain_encoder_forward(
        params, input_sequences, HIDDEN)
    jax.block_until_ready((outputs, h_n, c_n))

    out_ref, (h_ref, c_ref) = forward_ref(params, input_sequences, HIDDEN)

    assert outputs.shape == (SEQ, BATCH, HIDDEN)
    assert h_n.shape == (4, BATCH, HIDDEN) and c_n.shape == (4, BATCH, HIDDEN)
    # bf16 recurrent matmul (f32 accumulate) -> slightly looser tolerance.
    assert jnp.allclose(outputs, out_ref, atol=2e-2, rtol=2e-2)
    assert jnp.allclose(h_n, h_ref, atol=2e-2, rtol=2e-2)
    assert jnp.allclose(c_n, c_ref, atol=2e-2, rtol=2e-2)

    print("KERNEL_OK")
</pallas_src>

<mosaic_0001>
module attributes {stable_mosaic.version = 11 : i64} {
  func.func @_bidir_lstm_kernel(%arg0: i32, %arg1: i32, %arg2: memref<1x8x2x128xf32, #tpu.memory_space<vmem>>, %arg3: memref<1x32x128xbf16, #tpu.memory_space<vmem>>, %arg4: memref<1x2x32xf32, #tpu.memory_space<vmem>>, %arg5: memref<1x2x32xf32, #tpu.memory_space<vmem>>, %arg6: memref<1x8x2x32xf32, #tpu.memory_space<vmem>>, %arg7: memref<1x2x32xf32, #tpu.memory_space<vmem>>, %arg8: memref<2x32xf32, #tpu.memory_space<vmem>>, %arg9: memref<2x32xf32, #tpu.memory_space<vmem>>) attributes {dimension_semantics = [#tpu.dimension_semantics<parallel>, #tpu.dimension_semantics<arbitrary>], iteration_bounds = array<i64: 2, 1>, scalar_prefetch = 0 : i64, scratch_operands = 2 : i64, tpu.core_type = #tpu.core_type<tc>, window_params = [{transform_indices = @transform_0, window_bounds = array<i64: 1, 8, 2, 128>}, {transform_indices = @transform_1, window_bounds = array<i64: 1, 32, 128>}, {transform_indices = @transform_2, window_bounds = array<i64: 1, 2, 32>}, {transform_indices = @transform_3, window_bounds = array<i64: 1, 2, 32>}, {transform_indices = @transform_4, window_bounds = array<i64: 1, 8, 2, 32>}, {transform_indices = @transform_5, window_bounds = array<i64: 1, 2, 32>}]} {
    %c0_i32 = arith.constant 0 : i32
    %0 = arith.cmpi eq, %arg1, %c0_i32 : i32
    %1 = arith.extui %0 : i1 to i32
    %c0_i32_0 = arith.constant 0 : i32
    %2 = arith.cmpi ne, %1, %c0_i32_0 : i32
    scf.if %2 {
      %c0_179 = arith.constant 0 : index
      %c0_180 = arith.constant 0 : index
      %c0_181 = arith.constant 0 : index
      %351 = vector.load %arg4[%c0_179, %c0_180, %c0_181] : memref<1x2x32xf32, #tpu.memory_space<vmem>>, vector<1x2x32xf32>
      %352 = vector.shape_cast %351 : vector<1x2x32xf32> to vector<2x32xf32>
      %c0_182 = arith.constant 0 : index
      %c0_183 = arith.constant 0 : index
      %353 = vector.load %arg8[%c0_182, %c0_183] : memref<2x32xf32, #tpu.memory_space<vmem>>, vector<2x32xf32>
      tpu.vector_store %arg8[%c0_182, %c0_183], %352 {strides = array<i32>} : memref<2x32xf32, #tpu.memory_space<vmem>>, vector<2x32xf32>,
      %c0_184 = arith.constant 0 : index
      %c0_185 = arith.constant 0 : index
      %c0_186 = arith.constant 0 : index
      %354 = vector.load %arg5[%c0_184, %c0_185, %c0_186] : memref<1x2x32xf32, #tpu.memory_space<vmem>>, vector<1x2x32xf32>
      %355 = vector.shape_cast %354 : vector<1x2x32xf32> to vector<2x32xf32>
      %c0_187 = arith.constant 0 : index
      %c0_188 = arith.constant 0 : index
      %356 = vector.load %arg9[%c0_187, %c0_188] : memref<2x32xf32, #tpu.memory_space<vmem>>, vector<2x32xf32>
      tpu.vector_store %arg9[%c0_187, %c0_188], %355 {strides = array<i32>} : memref<2x32xf32, #tpu.memory_space<vmem>>, vector<2x32xf32>,
    } else {
    }
    %c1_i32 = arith.constant 1 : i32
    %3 = arith.cmpi eq, %arg0, %c1_i32 : i32
    %c0_i32_1 = arith.constant 0 : i32
    %c7_i32 = arith.constant 7 : i32
    %4 = arith.subi %c7_i32, %c0_i32_1 : i32
    %5 = arith.select %3, %4, %c0_i32_1 : i32
    %c0 = arith.constant 0 : index
    %6 = arith.index_cast %5 : i32 to index
    %c0_2 = arith.constant 0 : index
    %c0_3 = arith.constant 0 : index
    %7 = vector.load %arg2[%c0, %6, %c0_2, %c0_3] : memref<1x8x2x128xf32, #tpu.memory_space<vmem>>, vector<1x1x2x128xf32>
    %8 = vector.shape_cast %7 : vector<1x1x2x128xf32> to vector<2x128xf32>
    %c0_4 = arith.constant 0 : index
    %c0_5 = arith.constant 0 : index
    %9 = vector.load %arg8[%c0_4, %c0_5] : memref<2x32xf32, #tpu.memory_space<vmem>>, vector<2x32xf32>
    %10 = arith.truncf %9 : vector<2x32xf32> to vector<2x32xbf16>
    %c0_6 = arith.constant 0 : index
    %c0_7 = arith.constant 0 : index
    %c0_8 = arith.constant 0 : index
    %11 = vector.load %arg3[%c0_6, %c0_7, %c0_8] : memref<1x32x128xbf16, #tpu.memory_space<vmem>>, vector<1x32x128xbf16>
    %12 = vector.shape_cast %11 : vector<1x32x128xbf16> to vector<32x128xbf16>
    %cst = arith.constant dense<0.000000e+00> : vector<2x128xf32>
    %13 = tpu.matmul %10, %12, %cst {dimension_numbers = #tpu.dot_dimension_numbers<[1], [0], [0], [1], [0, 0, 1, 1], [], []>} : vector<2x32xbf16>, vector<32x128xbf16>, vector<2x128xf32> -> vector<2x128xf32>
    %14 = arith.addf %8, %13 : vector<2x128xf32>
    %15 = vector.extract_strided_slice %14 {offsets = [0, 0], sizes = [2, 32], strides = [1, 1]} : vector<2x128xf32> to vector<2x32xf32>
    %16 = arith.negf %15 : vector<2x32xf32>
    %17 = math.exp %16 : vector<2x32xf32>
    %cst_9 = arith.constant 1.000000e+00 : f32
    %18 = vector.broadcast %cst_9 : f32 to vector<2x32xf32>
    %19 = arith.addf %18, %17 : vector<2x32xf32>
    %20 = arith.divf %18, %19 : vector<2x32xf32>
    %21 = vector.extract_strided_slice %14 {offsets = [0, 32], sizes = [2, 32], strides = [1, 1]} : vector<2x128xf32> to vector<2x32xf32>
    %22 = arith.negf %21 : vector<2x32xf32>
    %23 = math.exp %22 : vector<2x32xf32>
    %cst_10 = arith.constant 1.000000e+00 : f32
    %24 = vector.broadcast %cst_10 : f32 to vector<2x32xf32>
    %25 = arith.addf %24, %23 : vector<2x32xf32>
    %26 = arith.divf %24, %25 : vector<2x32xf32>
    %27 = vector.extract_strided_slice %14 {offsets = [0, 64], sizes = [2, 32], strides = [1, 1]} : vector<2x128xf32> to vector<2x32xf32>
    %28 = math.tanh %27 : vector<2x32xf32>
    %29 = vector.extract_strided_slice %14 {offsets = [0, 96], sizes = [2, 32], strides = [1, 1]} : vector<2x128xf32> to vector<2x32xf32>
    %30 = arith.negf %29 : vector<2x32xf32>
    %31 = math.exp %30 : vector<2x32xf32>
    %cst_11 = arith.constant 1.000000e+00 : f32
    %32 = vector.broadcast %cst_11 : f32 to vector<2x32xf32>
    %33 = arith.addf %32, %31 : vector<2x32xf32>
    %34 = arith.divf %32, %33 : vector<2x32xf32>
    %c0_12 = arith.constant 0 : index
    %c0_13 = arith.constant 0 : index
    %35 = vector.load %arg9[%c0_12, %c0_13] : memref<2x32xf32, #tpu.memory_space<vmem>>, vector<2x32xf32>
    %36 = arith.mulf %26, %35 : vector<2x32xf32>
    %37 = arith.mulf %20, %28 : vector<2x32xf32>
    %38 = arith.addf %36, %37 : vector<2x32xf32>
    %39 = math.tanh %38 : vector<2x32xf32>
    %40 = arith.mulf %34, %39 : vector<2x32xf32>
    %c0_14 = arith.constant 0 : index
    %c0_15 = arith.constant 0 : index
    %41 = vector.load %arg8[%c0_14, %c0_15] : memref<2x32xf32, #tpu.memory_space<vmem>>, vector<2x32xf32>
    tpu.vector_store %arg8[%c0_14, %c0_15], %40 {strides = array<i32>} : memref<2x32xf32, #tpu.memory_space<vmem>>, vector<2x32xf32>,
    %c0_16 = arith.constant 0 : index
    %c0_17 = arith.constant 0 : index
    %42 = vector.load %arg9[%c0_16, %c0_17] : memref<2x32xf32, #tpu.memory_space<vmem>>, vector<2x32xf32>
    tpu.vector_store %arg9[%c0_16, %c0_17], %38 {strides = array<i32>} : memref<2x32xf32, #tpu.memory_space<vmem>>, vector<2x32xf32>,
    %c0_18 = arith.constant 0 : index
    %43 = arith.index_cast %5 : i32 to index
    %c0_19 = arith.constant 0 : index
    %c0_20 = arith.constant 0 : index
    %44 = vector.load %arg6[%c0_18, %43, %c0_19, %c0_20] : memref<1x8x2x32xf32, #tpu.memory_space<vmem>>, vector<1x1x2x32xf32>
    %45 = vector.shape_cast %44 : vector<1x1x2x32xf32> to vector<2x32xf32>
    %46 = vector.shape_cast %40 : vector<2x32xf32> to vector<1x1x2x32xf32>
    tpu.vector_store %arg6[%c0_18, %43, %c0_19, %c0_20], %46 {strides = array<i32>} : memref<1x8x2x32xf32, #tpu.memory_space<vmem>>, vector<1x1x2x32xf32>,
    %c1_i32_21 = arith.constant 1 : i32
    %c7_i32_22 = arith.constant 7 : i32
    %47 = arith.subi %c7_i32_22, %c1_i32_21 : i32
    %48 = arith.select %3, %47, %c1_i32_21 : i32
    %c0_23 = arith.constant 0 : index
    %49 = arith.index_cast %48 : i32 to index
    %c0_24 = arith.constant 0 : index
    %c0_25 = arith.constant 0 : index
    %50 = vector.load %arg2[%c0_23, %49, %c0_24, %c0_25] : memref<1x8x2x128xf32, #tpu.memory_space<vmem>>, vector<1x1x2x128xf32>
    %51 = vector.shape_cast %50 : vector<1x1x2x128xf32> to vector<2x128xf32>
    %c0_26 = arith.constant 0 : index
    %c0_27 = arith.constant 0 : index
    %52 = vector.load %arg8[%c0_26, %c0_27] : memref<2x32xf32, #tpu.memory_space<vmem>>, vector<2x32xf32>
    %53 = arith.truncf %52 : vector<2x32xf32> to vector<2x32xbf16>
    %c0_28 = arith.constant 0 : index
    %c0_29 = arith.constant 0 : index
    %c0_30 = arith.constant 0 : index
    %54 = vector.load %arg3[%c0_28, %c0_29, %c0_30] : memref<1x32x128xbf16, #tpu.memory_space<vmem>>, vector<1x32x128xbf16>
    %55 = vector.shape_cast %54 : vector<1x32x128xbf16> to vector<32x128xbf16>
    %cst_31 = arith.constant dense<0.000000e+00> : vector<2x128xf32>
    %56 = tpu.matmul %53, %55, %cst_31 {dimension_numbers = #tpu.dot_dimension_numbers<[1], [0], [0], [1], [0, 0, 1, 1], [], []>} : vector<2x32xbf16>, vector<32x128xbf16>, vector<2x128xf32> -> vector<2x128xf32>
    %57 = arith.addf %51, %56 : vector<2x128xf32>
    %58 = vector.extract_strided_slice %57 {offsets = [0, 0], sizes = [2, 32], strides = [1, 1]} : vector<2x128xf32> to vector<2x32xf32>
    %59 = arith.negf %58 : vector<2x32xf32>
    %60 = math.exp %59 : vector<2x32xf32>
    %cst_32 = arith.constant 1.000000e+00 : f32
    %61 = vector.broadcast %cst_32 : f32 to vector<2x32xf32>
    %62 = arith.addf %61, %60 : vector<2x32xf32>
    %63 = arith.divf %61, %62 : vector<2x32xf32>
    %64 = vector.extract_strided_slice %57 {offsets = [0, 32], sizes = [2, 32], strides = [1, 1]} : vector<2x128xf32> to vector<2x32xf32>
    %65 = arith.negf %64 : vector<2x32xf32>
    %66 = math.exp %65 : vector<2x32xf32>
    %cst_33 = arith.constant 1.000000e+00 : f32
    %67 = vector.broadcast %cst_33 : f32 to vector<2x32xf32>
    %68 = arith.addf %67, %66 : vector<2x32xf32>
    %69 = arith.divf %67, %68 : vector<2x32xf32>
    %70 = vector.extract_strided_slice %57 {offsets = [0, 64], sizes = [2, 32], strides = [1, 1]} : vector<2x128xf32> to vector<2x32xf32>
    %71 = math.tanh %70 : vector<2x32xf32>
    %72 = vector.extract_strided_slice %57 {offsets = [0, 96], sizes = [2, 32], strides = [1, 1]} : vector<2x128xf32> to vector<2x32xf32>
    %73 = arith.negf %72 : vector<2x32xf32>
    %74 = math.exp %73 : vector<2x32xf32>
    %cst_34 = arith.constant 1.000000e+00 : f32
    %75 = vector.broadcast %cst_34 : f32 to vector<2x32xf32>
    %76 = arith.addf %75, %74 : vector<2x32xf32>
    %77 = arith.divf %75, %76 : vector<2x32xf32>
    %c0_35 = arith.constant 0 : index
    %c0_36 = arith.constant 0 : index
    %78 = vector.load %arg9[%c0_35, %c0_36] : memref<2x32xf32, #tpu.memory_space<vmem>>, vector<2x32xf32>
    %79 = arith.mulf %69, %78 : vector<2x32xf32>
    %80 = arith.mulf %63, %71 : vector<2x32xf32>
    %81 = arith.addf %79, %80 : vector<2x32xf32>
    %82 = math.tanh %81 : vector<2x32xf32>
    %83 = arith.mulf %77, %82 : vector<2x32xf32>
    %c0_37 = arith.constant 0 : index
    %c0_38 = arith.constant 0 : index
    %84 = vector.load %arg8[%c0_37, %c0_38] : memref<2x32xf32, #tpu.memory_space<vmem>>, vector<2x32xf32>
    tpu.vector_store %arg8[%c0_37, %c0_38], %83 {strides = array<i32>} : memref<2x32xf32, #tpu.memory_space<vmem>>, vector<2x32xf32>,
    %c0_39 = arith.constant 0 : index
    %c0_40 = arith.constant 0 : index
    %85 = vector.load %arg9[%c0_39, %c0_40] : memref<2x32xf32, #tpu.memory_space<vmem>>, vector<2x32xf32>
    tpu.vector_store %arg9[%c0_39, %c0_40], %81 {strides = array<i32>} : memref<2x32xf32, #tpu.memory_space<vmem>>, vector<2x32xf32>,
    %c0_41 = arith.constant 0 : index
    %86 = arith.index_cast %48 : i32 to index
    %c0_42 = arith.constant 0 : index
    %c0_43 = arith.constant 0 : index
    %87 = vector.load %arg6[%c0_41, %86, %c0_42, %c0_43] : memref<1x8x2x32xf32, #tpu.memory_space<vmem>>, vector<1x1x2x32xf32>
    %88 = vector.shape_cast %87 : vector<1x1x2x32xf32> to vector<2x32xf32>
    %89 = vector.shape_cast %83 : vector<2x32xf32> to vector<1x1x2x32xf32>
    tpu.vector_store %arg6[%c0_41, %86, %c0_42, %c0_43], %89 {strides = array<i32>} : memref<1x8x2x32xf32, #tpu.memory_space<vmem>>, vector<1x1x2x32xf32>,
    %c2_i32 = arith.constant 2 : i32
    %c7_i32_44 = arith.constant 7 : i32
    %90 = arith.subi %c7_i32_44, %c2_i32 : i32
    %91 = arith.select %3, %90, %c2_i32 : i32
    %c0_45 = arith.constant 0 : index
    %92 = arith.index_cast %91 : i32 to index
    %c0_46 = arith.constant 0 : index
    %c0_47 = arith.constant 0 : index
    %93 = vector.load %arg2[%c0_45, %92, %c0_46, %c0_47] : memref<1x8x2x128xf32, #tpu.memory_space<vmem>>, vector<1x1x2x128xf32>
    %94 = vector.shape_cast %93 : vector<1x1x2x128xf32> to vector<2x128xf32>
    %c0_48 = arith.constant 0 : index
    %c0_49 = arith.constant 0 : index
    %95 = vector.load %arg8[%c0_48, %c0_49] : memref<2x32xf32, #tpu.memory_space<vmem>>, vector<2x32xf32>
    %96 = arith.truncf %95 : vector<2x32xf32> to vector<2x32xbf16>
    %c0_50 = arith.constant 0 : index
    %c0_51 = arith.constant 0 : index
    %c0_52 = arith.constant 0 : index
    %97 = vector.load %arg3[%c0_50, %c0_51, %c0_52] : memref<1x32x128xbf16, #tpu.memory_space<vmem>>, vector<1x32x128xbf16>
    %98 = vector.shape_cast %97 : vector<1x32x128xbf16> to vector<32x128xbf16>
    %cst_53 = arith.constant dense<0.000000e+00> : vector<2x128xf32>
    %99 = tpu.matmul %96, %98, %cst_53 {dimension_numbers = #tpu.dot_dimension_numbers<[1], [0], [0], [1], [0, 0, 1, 1], [], []>} : vector<2x32xbf16>, vector<32x128xbf16>, vector<2x128xf32> -> vector<2x128xf32>
    %100 = arith.addf %94, %99 : vector<2x128xf32>
    %101 = vector.extract_strided_slice %100 {offsets = [0, 0], sizes = [2, 32], strides = [1, 1]} : vector<2x128xf32> to vector<2x32xf32>
    %102 = arith.negf %101 : vector<2x32xf32>
    %103 = math.exp %102 : vector<2x32xf32>
    %cst_54 = arith.constant 1.000000e+00 : f32
    %104 = vector.broadcast %cst_54 : f32 to vector<2x32xf32>
    %105 = arith.addf %104, %103 : vector<2x32xf32>
    %106 = arith.divf %104, %105 : vector<2x32xf32>
    %107 = vector.extract_strided_slice %100 {offsets = [0, 32], sizes = [2, 32], strides = [1, 1]} : vector<2x128xf32> to vector<2x32xf32>
    %108 = arith.negf %107 : vector<2x32xf32>
    %109 = math.exp %108 : vector<2x32xf32>
    %cst_55 = arith.constant 1.000000e+00 : f32
    %110 = vector.broadcast %cst_55 : f32 to vector<2x32xf32>
    %111 = arith.addf %110, %109 : vector<2x32xf32>
    %112 = arith.divf %110, %111 : vector<2x32xf32>
    %113 = vector.extract_strided_slice %100 {offsets = [0, 64], sizes = [2, 32], strides = [1, 1]} : vector<2x128xf32> to vector<2x32xf32>
    %114 = math.tanh %113 : vector<2x32xf32>
    %115 = vector.extract_strided_slice %100 {offsets = [0, 96], sizes = [2, 32], strides = [1, 1]} : vector<2x128xf32> to vector<2x32xf32>
    %116 = arith.negf %115 : vector<2x32xf32>
    %117 = math.exp %116 : vector<2x32xf32>
    %cst_56 = arith.constant 1.000000e+00 : f32
    %118 = vector.broadcast %cst_56 : f32 to vector<2x32xf32>
    %119 = arith.addf %118, %117 : vector<2x32xf32>
    %120 = arith.divf %118, %119 : vector<2x32xf32>
    %c0_57 = arith.constant 0 : index
    %c0_58 = arith.constant 0 : index
    %121 = vector.load %arg9[%c0_57, %c0_58] : memref<2x32xf32, #tpu.memory_space<vmem>>, vector<2x32xf32>
    %122 = arith.mulf %112, %121 : vector<2x32xf32>
    %123 = arith.mulf %106, %114 : vector<2x32xf32>
    %124 = arith.addf %122, %123 : vector<2x32xf32>
    %125 = math.tanh %124 : vector<2x32xf32>
    %126 = arith.mulf %120, %125 : vector<2x32xf32>
    %c0_59 = arith.constant 0 : index
    %c0_60 = arith.constant 0 : index
    %127 = vector.load %arg8[%c0_59, %c0_60] : memref<2x32xf32, #tpu.memory_space<vmem>>, vector<2x32xf32>
    tpu.vector_store %arg8[%c0_59, %c0_60], %126 {strides = array<i32>} : memref<2x32xf32, #tpu.memory_space<vmem>>, vector<2x32xf32>,
    %c0_61 = arith.constant 0 : index
    %c0_62 = arith.constant 0 : index
    %128 = vector.load %arg9[%c0_61, %c0_62] : memref<2x32xf32, #tpu.memory_space<vmem>>, vector<2x32xf32>
    tpu.vector_store %arg9[%c0_61, %c0_62], %124 {strides = array<i32>} : memref<2x32xf32, #tpu.memory_space<vmem>>, vector<2x32xf32>,
    %c0_63 = arith.constant 0 : index
    %129 = arith.index_cast %91 : i32 to index
    %c0_64 = arith.constant 0 : index
    %c0_65 = arith.constant 0 : index
    %130 = vector.load %arg6[%c0_63, %129, %c0_64, %c0_65] : memref<1x8x2x32xf32, #tpu.memory_space<vmem>>, vector<1x1x2x32xf32>
    %131 = vector.shape_cast %130 : vector<1x1x2x32xf32> to vector<2x32xf32>
    %132 = vector.shape_cast %126 : vector<2x32xf32> to vector<1x1x2x32xf32>
    tpu.vector_store %arg6[%c0_63, %129, %c0_64, %c0_65], %132 {strides = array<i32>} : memref<1x8x2x32xf32, #tpu.memory_space<vmem>>, vector<1x1x2x32xf32>,
    %c3_i32 = arith.constant 3 : i32
    %c7_i32_66 = arith.constant 7 : i32
    %133 = arith.subi %c7_i32_66, %c3_i32 : i32
    %134 = arith.select %3, %133, %c3_i32 : i32
    %c0_67 = arith.constant 0 : index
    %135 = arith.index_cast %134 : i32 to index
    %c0_68 = arith.constant 0 : index
    %c0_69 = arith.constant 0 : index
    %136 = vector.load %arg2[%c0_67, %135, %c0_68, %c0_69] : memref<1x8x2x128xf32, #tpu.memory_space<vmem>>, vector<1x1x2x128xf32>
    %137 = vector.shape_cast %136 : vector<1x1x2x128xf32> to vector<2x128xf32>
    %c0_70 = arith.constant 0 : index
    %c0_71 = arith.constant 0 : index
    %138 = vector.load %arg8[%c0_70, %c0_71] : memref<2x32xf32, #tpu.memory_space<vmem>>, vector<2x32xf32>
    %139 = arith.truncf %138 : vector<2x32xf32> to vector<2x32xbf16>
    %c0_72 = arith.constant 0 : index
    %c0_73 = arith.constant 0 : index
    %c0_74 = arith.constant 0 : index
    %140 = vector.load %arg3[%c0_72, %c0_73, %c0_74] : memref<1x32x128xbf16, #tpu.memory_space<vmem>>, vector<1x32x128xbf16>
    %141 = vector.shape_cast %140 : vector<1x32x128xbf16> to vector<32x128xbf16>
    %cst_75 = arith.constant dense<0.000000e+00> : vector<2x128xf32>
    %142 = tpu.matmul %139, %141, %cst_75 {dimension_numbers = #tpu.dot_dimension_numbers<[1], [0], [0], [1], [0, 0, 1, 1], [], []>} : vector<2x32xbf16>, vector<32x128xbf16>, vector<2x128xf32> -> vector<2x128xf32>
    %143 = arith.addf %137, %142 : vector<2x128xf32>
    %144 = vector.extract_strided_slice %143 {offsets = [0, 0], sizes = [2, 32], strides = [1, 1]} : vector<2x128xf32> to vector<2x32xf32>
    %145 = arith.negf %144 : vector<2x32xf32>
    %146 = math.exp %145 : vector<2x32xf32>
    %cst_76 = arith.constant 1.000000e+00 : f32
    %147 = vector.broadcast %cst_76 : f32 to vector<2x32xf32>
    %148 = arith.addf %147, %146 : vector<2x32xf32>
    %149 = arith.divf %147, %148 : vector<2x32xf32>
    %150 = vector.extract_strided_slice %143 {offsets = [0, 32], sizes = [2, 32], strides = [1, 1]} : vector<2x128xf32> to vector<2x32xf32>
    %151 = arith.negf %150 : vector<2x32xf32>
    %152 = math.exp %151 : vector<2x32xf32>
    %cst_77 = arith.constant 1.000000e+00 : f32
    %153 = vector.broadcast %cst_77 : f32 to vector<2x32xf32>
    %154 = arith.addf %153, %152 : vector<2x32xf32>
    %155 = arith.divf %153, %154 : vector<2x32xf32>
    %156 = vector.extract_strided_slice %143 {offsets = [0, 64], sizes = [2, 32], strides = [1, 1]} : vector<2x128xf32> to vector<2x32xf32>
    %157 = math.tanh %156 : vector<2x32xf32>
    %158 = vector.extract_strided_slice %143 {offsets = [0, 96], sizes = [2, 32], strides = [1, 1]} : vector<2x128xf32> to vector<2x32xf32>
    %159 = arith.negf %158 : vector<2x32xf32>
    %160 = math.exp %159 : vector<2x32xf32>
    %cst_78 = arith.constant 1.000000e+00 : f32
    %161 = vector.broadcast %cst_78 : f32 to vector<2x32xf32>
    %162 = arith.addf %161, %160 : vector<2x32xf32>
    %163 = arith.divf %161, %162 : vector<2x32xf32>
    %c0_79 = arith.constant 0 : index
    %c0_80 = arith.constant 0 : index
    %164 = vector.load %arg9[%c0_79, %c0_80] : memref<2x32xf32, #tpu.memory_space<vmem>>, vector<2x32xf32>
    %165 = arith.mulf %155, %164 : vector<2x32xf32>
    %166 = arith.mulf %149, %157 : vector<2x32xf32>
    %167 = arith.addf %165, %166 : vector<2x32xf32>
    %168 = math.tanh %167 : vector<2x32xf32>
    %169 = arith.mulf %163, %168 : vector<2x32xf32>
    %c0_81 = arith.constant 0 : index
    %c0_82 = arith.constant 0 : index
    %170 = vector.load %arg8[%c0_81, %c0_82] : memref<2x32xf32, #tpu.memory_space<vmem>>, vector<2x32xf32>
    tpu.vector_store %arg8[%c0_81, %c0_82], %169 {strides = array<i32>} : memref<2x32xf32, #tpu.memory_space<vmem>>, vector<2x32xf32>,
    %c0_83 = arith.constant 0 : index
    %c0_84 = arith.constant 0 : index
    %171 = vector.load %arg9[%c0_83, %c0_84] : memref<2x32xf32, #tpu.memory_space<vmem>>, vector<2x32xf32>
    tpu.vector_store %arg9[%c0_83, %c0_84], %167 {strides = array<i32>} : memref<2x32xf32, #tpu.memory_space<vmem>>, vector<2x32xf32>,
    %c0_85 = arith.constant 0 : index
    %172 = arith.index_cast %134 : i32 to index
    %c0_86 = arith.constant 0 : index
    %c0_87 = arith.constant 0 : index
    %173 = vector.load %arg6[%c0_85, %172, %c0_86, %c0_87] : memref<1x8x2x32xf32, #tpu.memory_space<vmem>>, vector<1x1x2x32xf32>
    %174 = vector.shape_cast %173 : vector<1x1x2x32xf32> to vector<2x32xf32>
    %175 = vector.shape_cast %169 : vector<2x32xf32> to vector<1x1x2x32xf32>
    tpu.vector_store %arg6[%c0_85, %172, %c0_86, %c0_87], %175 {strides = array<i32>} : memref<1x8x2x32xf32, #tpu.memory_space<vmem>>, vector<1x1x2x32xf32>,
    %c4_i32 = arith.constant 4 : i32
    %c7_i32_88 = arith.constant 7 : i32
    %176 = arith.subi %c7_i32_88, %c4_i32 : i32
    %177 = arith.select %3, %176, %c4_i32 : i32
    %c0_89 = arith.constant 0 : index
    %178 = arith.index_cast %177 : i32 to index
    %c0_90 = arith.constant 0 : index
    %c0_91 = arith.constant 0 : index
    %179 = vector.load %arg2[%c0_89, %178, %c0_90, %c0_91] : memref<1x8x2x128xf32, #tpu.memory_space<vmem>>, vector<1x1x2x128xf32>
    %180 = vector.shape_cast %179 : vector<1x1x2x128xf32> to vector<2x128xf32>
    %c0_92 = arith.constant 0 : index
    %c0_93 = arith.constant 0 : index
    %181 = vector.load %arg8[%c0_92, %c0_93] : memref<2x32xf32, #tpu.memory_space<vmem>>, vector<2x32xf32>
    %182 = arith.truncf %181 : vector<2x32xf32> to vector<2x32xbf16>
    %c0_94 = arith.constant 0 : index
    %c0_95 = arith.constant 0 : index
    %c0_96 = arith.constant 0 : index
    %183 = vector.load %arg3[%c0_94, %c0_95, %c0_96] : memref<1x32x128xbf16, #tpu.memory_space<vmem>>, vector<1x32x128xbf16>
    %184 = vector.shape_cast %183 : vector<1x32x128xbf16> to vector<32x128xbf16>
    %cst_97 = arith.constant dense<0.000000e+00> : vector<2x128xf32>
    %185 = tpu.matmul %182, %184, %cst_97 {dimension_numbers = #tpu.dot_dimension_numbers<[1], [0], [0], [1], [0, 0, 1, 1], [], []>} : vector<2x32xbf16>, vector<32x128xbf16>, vector<2x128xf32> -> vector<2x128xf32>
    %186 = arith.addf %180, %185 : vector<2x128xf32>
    %187 = vector.extract_strided_slice %186 {offsets = [0, 0], sizes = [2, 32], strides = [1, 1]} : vector<2x128xf32> to vector<2x32xf32>
    %188 = arith.negf %187 : vector<2x32xf32>
    %189 = math.exp %188 : vector<2x32xf32>
    %cst_98 = arith.constant 1.000000e+00 : f32
    %190 = vector.broadcast %cst_98 : f32 to vector<2x32xf32>
    %191 = arith.addf %190, %189 : vector<2x32xf32>
    %192 = arith.divf %190, %191 : vector<2x32xf32>
    %193 = vector.extract_strided_slice %186 {offsets = [0, 32], sizes = [2, 32], strides = [1, 1]} : vector<2x128xf32> to vector<2x32xf32>
    %194 = arith.negf %193 : vector<2x32xf32>
    %195 = math.exp %194 : vector<2x32xf32>
    %cst_99 = arith.constant 1.000000e+00 : f32
    %196 = vector.broadcast %cst_99 : f32 to vector<2x32xf32>
    %197 = arith.addf %196, %195 : vector<2x32xf32>
    %198 = arith.divf %196, %197 : vector<2x32xf32>
    %199 = vector.extract_strided_slice %186 {offsets = [0, 64], sizes = [2, 32], strides = [1, 1]} : vector<2x128xf32> to vector<2x32xf32>
    %200 = math.tanh %199 : vector<2x32xf32>
    %201 = vector.extract_strided_slice %186 {offsets = [0, 96], sizes = [2, 32], strides = [1, 1]} : vector<2x128xf32> to vector<2x32xf32>
    %202 = arith.negf %201 : vector<2x32xf32>
    %203 = math.exp %202 : vector<2x32xf32>
    %cst_100 = arith.constant 1.000000e+00 : f32
    %204 = vector.broadcast %cst_100 : f32 to vector<2x32xf32>
    %205 = arith.addf %204, %203 : vector<2x32xf32>
    %206 = arith.divf %204, %205 : vector<2x32xf32>
    %c0_101 = arith.constant 0 : index
    %c0_102 = arith.constant 0 : index
    %207 = vector.load %arg9[%c0_101, %c0_102] : memref<2x32xf32, #tpu.memory_space<vmem>>, vector<2x32xf32>
    %208 = arith.mulf %198, %207 : vector<2x32xf32>
    %209 = arith.mulf %192, %200 : vector<2x32xf32>
    %210 = arith.addf %208, %209 : vector<2x32xf32>
    %211 = math.tanh %210 : vector<2x32xf32>
    %212 = arith.mulf %206, %211 : vector<2x32xf32>
    %c0_103 = arith.constant 0 : index
    %c0_104 = arith.constant 0 : index
    %213 = vector.load %arg8[%c0_103, %c0_104] : memref<2x32xf32, #tpu.memory_space<vmem>>, vector<2x32xf32>
    tpu.vector_store %arg8[%c0_103, %c0_104], %212 {strides = array<i32>} : memref<2x32xf32, #tpu.memory_space<vmem>>, vector<2x32xf32>,
    %c0_105 = arith.constant 0 : index
    %c0_106 = arith.constant 0 : index
    %214 = vector.load %arg9[%c0_105, %c0_106] : memref<2x32xf32, #tpu.memory_space<vmem>>, vector<2x32xf32>
    tpu.vector_store %arg9[%c0_105, %c0_106], %210 {strides = array<i32>} : memref<2x32xf32, #tpu.memory_space<vmem>>, vector<2x32xf32>,
    %c0_107 = arith.constant 0 : index
    %215 = arith.index_cast %177 : i32 to index
    %c0_108 = arith.constant 0 : index
    %c0_109 = arith.constant 0 : index
    %216 = vector.load %arg6[%c0_107, %215, %c0_108, %c0_109] : memref<1x8x2x32xf32, #tpu.memory_space<vmem>>, vector<1x1x2x32xf32>
    %217 = vector.shape_cast %216 : vector<1x1x2x32xf32> to vector<2x32xf32>
    %218 = vector.shape_cast %212 : vector<2x32xf32> to vector<1x1x2x32xf32>
    tpu.vector_store %arg6[%c0_107, %215, %c0_108, %c0_109], %218 {strides = array<i32>} : memref<1x8x2x32xf32, #tpu.memory_space<vmem>>, vector<1x1x2x32xf32>,
    %c5_i32 = arith.constant 5 : i32
    %c7_i32_110 = arith.constant 7 : i32
    %219 = arith.subi %c7_i32_110, %c5_i32 : i32
    %220 = arith.select %3, %219, %c5_i32 : i32
    %c0_111 = arith.constant 0 : index
    %221 = arith.index_cast %220 : i32 to index
    %c0_112 = arith.constant 0 : index
    %c0_113 = arith.constant 0 : index
    %222 = vector.load %arg2[%c0_111, %221, %c0_112, %c0_113] : memref<1x8x2x128xf32, #tpu.memory_space<vmem>>, vector<1x1x2x128xf32>
    %223 = vector.shape_cast %222 : vector<1x1x2x128xf32> to vector<2x128xf32>
    %c0_114 = arith.constant 0 : index
    %c0_115 = arith.constant 0 : index
    %224 = vector.load %arg8[%c0_114, %c0_115] : memref<2x32xf32, #tpu.memory_space<vmem>>, vector<2x32xf32>
    %225 = arith.truncf %224 : vector<2x32xf32> to vector<2x32xbf16>
    %c0_116 = arith.constant 0 : index
    %c0_117 = arith.constant 0 : index
    %c0_118 = arith.constant 0 : index
    %226 = vector.load %arg3[%c0_116, %c0_117, %c0_118] : memref<1x32x128xbf16, #tpu.memory_space<vmem>>, vector<1x32x128xbf16>
    %227 = vector.shape_cast %226 : vector<1x32x128xbf16> to vector<32x128xbf16>
    %cst_119 = arith.constant dense<0.000000e+00> : vector<2x128xf32>
    %228 = tpu.matmul %225, %227, %cst_119 {dimension_numbers = #tpu.dot_dimension_numbers<[1], [0], [0], [1], [0, 0, 1, 1], [], []>} : vector<2x32xbf16>, vector<32x128xbf16>, vector<2x128xf32> -> vector<2x128xf32>
    %229 = arith.addf %223, %228 : vector<2x128xf32>
    %230 = vector.extract_strided_slice %229 {offsets = [0, 0], sizes = [2, 32], strides = [1, 1]} : vector<2x128xf32> to vector<2x32xf32>
    %231 = arith.negf %230 : vector<2x32xf32>
    %232 = math.exp %231 : vector<2x32xf32>
    %cst_120 = arith.constant 1.000000e+00 : f32
    %233 = vector.broadcast %cst_120 : f32 to vector<2x32xf32>
    %234 = arith.addf %233, %232 : vector<2x32xf32>
    %235 = arith.divf %233, %234 : vector<2x32xf32>
    %236 = vector.extract_strided_slice %229 {offsets = [0, 32], sizes = [2, 32], strides = [1, 1]} : vector<2x128xf32> to vector<2x32xf32>
    %237 = arith.negf %236 : vector<2x32xf32>
    %238 = math.exp %237 : vector<2x32xf32>
    %cst_121 = arith.constant 1.000000e+00 : f32
    %239 = vector.broadcast %cst_121 : f32 to vector<2x32xf32>
    %240 = arith.addf %239, %238 : vector<2x32xf32>
    %241 = arith.divf %239, %240 : vector<2x32xf32>
    %242 = vector.extract_strided_slice %229 {offsets = [0, 64], sizes = [2, 32], strides = [1, 1]} : vector<2x128xf32> to vector<2x32xf32>
    %243 = math.tanh %242 : vector<2x32xf32>
    %244 = vector.extract_strided_slice %229 {offsets = [0, 96], sizes = [2, 32], strides = [1, 1]} : vector<2x128xf32> to vector<2x32xf32>
    %245 = arith.negf %244 : vector<2x32xf32>
    %246 = math.exp %245 : vector<2x32xf32>
    %cst_122 = arith.constant 1.000000e+00 : f32
    %247 = vector.broadcast %cst_122 : f32 to vector<2x32xf32>
    %248 = arith.addf %247, %246 : vector<2x32xf32>
    %249 = arith.divf %247, %248 : vector<2x32xf32>
    %c0_123 = arith.constant 0 : index
    %c0_124 = arith.constant 0 : index
    %250 = vector.load %arg9[%c0_123, %c0_124] : memref<2x32xf32, #tpu.memory_space<vmem>>, vector<2x32xf32>
    %251 = arith.mulf %241, %250 : vector<2x32xf32>
    %252 = arith.mulf %235, %243 : vector<2x32xf32>
    %253 = arith.addf %251, %252 : vector<2x32xf32>
    %254 = math.tanh %253 : vector<2x32xf32>
    %255 = arith.mulf %249, %254 : vector<2x32xf32>
    %c0_125 = arith.constant 0 : index
    %c0_126 = arith.constant 0 : index
    %256 = vector.load %arg8[%c0_125, %c0_126] : memref<2x32xf32, #tpu.memory_space<vmem>>, vector<2x32xf32>
    tpu.vector_store %arg8[%c0_125, %c0_126], %255 {strides = array<i32>} : memref<2x32xf32, #tpu.memory_space<vmem>>, vector<2x32xf32>,
    %c0_127 = arith.constant 0 : index
    %c0_128 = arith.constant 0 : index
    %257 = vector.load %arg9[%c0_127, %c0_128] : memref<2x32xf32, #tpu.memory_space<vmem>>, vector<2x32xf32>
    tpu.vector_store %arg9[%c0_127, %c0_128], %253 {strides = array<i32>} : memref<2x32xf32, #tpu.memory_space<vmem>>, vector<2x32xf32>,
    %c0_129 = arith.constant 0 : index
    %258 = arith.index_cast %220 : i32 to index
    %c0_130 = arith.constant 0 : index
    %c0_131 = arith.constant 0 : index
    %259 = vector.load %arg6[%c0_129, %258, %c0_130, %c0_131] : memref<1x8x2x32xf32, #tpu.memory_space<vmem>>, vector<1x1x2x32xf32>
    %260 = vector.shape_cast %259 : vector<1x1x2x32xf32> to vector<2x32xf32>
    %261 = vector.shape_cast %255 : vector<2x32xf32> to vector<1x1x2x32xf32>
    tpu.vector_store %arg6[%c0_129, %258, %c0_130, %c0_131], %261 {strides = array<i32>} : memref<1x8x2x32xf32, #tpu.memory_space<vmem>>, vector<1x1x2x32xf32>,
    %c6_i32 = arith.constant 6 : i32
    %c7_i32_132 = arith.constant 7 : i32
    %262 = arith.subi %c7_i32_132, %c6_i32 : i32
    %263 = arith.select %3, %262, %c6_i32 : i32
    %c0_133 = arith.constant 0 : index
    %264 = arith.index_cast %263 : i32 to index
    %c0_134 = arith.constant 0 : index
    %c0_135 = arith.constant 0 : index
    %265 = vector.load %arg2[%c0_133, %264, %c0_134, %c0_135] : memref<1x8x2x128xf32, #tpu.memory_space<vmem>>, vector<1x1x2x128xf32>
    %266 = vector.shape_cast %265 : vector<1x1x2x128xf32> to vector<2x128xf32>
    %c0_136 = arith.constant 0 : index
    %c0_137 = arith.constant 0 : index
    %267 = vector.load %arg8[%c0_136, %c0_137] : memref<2x32xf32, #tpu.memory_space<vmem>>, vector<2x32xf32>
    %268 = arith.truncf %267 : vector<2x32xf32> to vector<2x32xbf16>
    %c0_138 = arith.constant 0 : index
    %c0_139 = arith.constant 0 : index
    %c0_140 = arith.constant 0 : index
    %269 = vector.load %arg3[%c0_138, %c0_139, %c0_140] : memref<1x32x128xbf16, #tpu.memory_space<vmem>>, vector<1x32x128xbf16>
    %270 = vector.shape_cast %269 : vector<1x32x128xbf16> to vector<32x128xbf16>
    %cst_141 = arith.constant dense<0.000000e+00> : vector<2x128xf32>
    %271 = tpu.matmul %268, %270, %cst_141 {dimension_numbers = #tpu.dot_dimension_numbers<[1], [0], [0], [1], [0, 0, 1, 1], [], []>} : vector<2x32xbf16>, vector<32x128xbf16>, vector<2x128xf32> -> vector<2x128xf32>
    %272 = arith.addf %266, %271 : vector<2x128xf32>
    %273 = vector.extract_strided_slice %272 {offsets = [0, 0], sizes = [2, 32], strides = [1, 1]} : vector<2x128xf32> to vector<2x32xf32>
    %274 = arith.negf %273 : vector<2x32xf32>
    %275 = math.exp %274 : vector<2x32xf32>
    %cst_142 = arith.constant 1.000000e+00 : f32
    %276 = vector.broadcast %cst_142 : f32 to vector<2x32xf32>
    %277 = arith.addf %276, %275 : vector<2x32xf32>
    %278 = arith.divf %276, %277 : vector<2x32xf32>
    %279 = vector.extract_strided_slice %272 {offsets = [0, 32], sizes = [2, 32], strides = [1, 1]} : vector<2x128xf32> to vector<2x32xf32>
    %280 = arith.negf %279 : vector<2x32xf32>
    %281 = math.exp %280 : vector<2x32xf32>
    %cst_143 = arith.constant 1.000000e+00 : f32
    %282 = vector.broadcast %cst_143 : f32 to vector<2x32xf32>
    %283 = arith.addf %282, %281 : vector<2x32xf32>
    %284 = arith.divf %282, %283 : vector<2x32xf32>
    %285 = vector.extract_strided_slice %272 {offsets = [0, 64], sizes = [2, 32], strides = [1, 1]} : vector<2x128xf32> to vector<2x32xf32>
    %286 = math.tanh %285 : vector<2x32xf32>
    %287 = vector.extract_strided_slice %272 {offsets = [0, 96], sizes = [2, 32], strides = [1, 1]} : vector<2x128xf32> to vector<2x32xf32>
    %288 = arith.negf %287 : vector<2x32xf32>
    %289 = math.exp %288 : vector<2x32xf32>
    %cst_144 = arith.constant 1.000000e+00 : f32
    %290 = vector.broadcast %cst_144 : f32 to vector<2x32xf32>
    %291 = arith.addf %290, %289 : vector<2x32xf32>
    %292 = arith.divf %290, %291 : vector<2x32xf32>
    %c0_145 = arith.constant 0 : index
    %c0_146 = arith.constant 0 : index
    %293 = vector.load %arg9[%c0_145, %c0_146] : memref<2x32xf32, #tpu.memory_space<vmem>>, vector<2x32xf32>
    %294 = arith.mulf %284, %293 : vector<2x32xf32>
    %295 = arith.mulf %278, %286 : vector<2x32xf32>
    %296 = arith.addf %294, %295 : vector<2x32xf32>
    %297 = math.tanh %296 : vector<2x32xf32>
    %298 = arith.mulf %292, %297 : vector<2x32xf32>
    %c0_147 = arith.constant 0 : index
    %c0_148 = arith.constant 0 : index
    %299 = vector.load %arg8[%c0_147, %c0_148] : memref<2x32xf32, #tpu.memory_space<vmem>>, vector<2x32xf32>
    tpu.vector_store %arg8[%c0_147, %c0_148], %298 {strides = array<i32>} : memref<2x32xf32, #tpu.memory_space<vmem>>, vector<2x32xf32>,
    %c0_149 = arith.constant 0 : index
    %c0_150 = arith.constant 0 : index
    %300 = vector.load %arg9[%c0_149, %c0_150] : memref<2x32xf32, #tpu.memory_space<vmem>>, vector<2x32xf32>
    tpu.vector_store %arg9[%c0_149, %c0_150], %296 {strides = array<i32>} : memref<2x32xf32, #tpu.memory_space<vmem>>, vector<2x32xf32>,
    %c0_151 = arith.constant 0 : index
    %301 = arith.index_cast %263 : i32 to index
    %c0_152 = arith.constant 0 : index
    %c0_153 = arith.constant 0 : index
    %302 = vector.load %arg6[%c0_151, %301, %c0_152, %c0_153] : memref<1x8x2x32xf32, #tpu.memory_space<vmem>>, vector<1x1x2x32xf32>
    %303 = vector.shape_cast %302 : vector<1x1x2x32xf32> to vector<2x32xf32>
    %304 = vector.shape_cast %298 : vector<2x32xf32> to vector<1x1x2x32xf32>
    tpu.vector_store %arg6[%c0_151, %301, %c0_152, %c0_153], %304 {strides = array<i32>} : memref<1x8x2x32xf32, #tpu.memory_space<vmem>>, vector<1x1x2x32xf32>,
    %c7_i32_154 = arith.constant 7 : i32
    %c7_i32_155 = arith.constant 7 : i32
    %305 = arith.subi %c7_i32_155, %c7_i32_154 : i32
    %306 = arith.select %3, %305, %c7_i32_154 : i32
    %c0_156 = arith.constant 0 : index
    %307 = arith.index_cast %306 : i32 to index
    %c0_157 = arith.constant 0 : index
    %c0_158 = arith.constant 0 : index
    %308 = vector.load %arg2[%c0_156, %307, %c0_157, %c0_158] : memref<1x8x2x128xf32, #tpu.memory_space<vmem>>, vector<1x1x2x128xf32>
    %309 = vector.shape_cast %308 : vector<1x1x2x128xf32> to vector<2x128xf32>
    %c0_159 = arith.constant 0 : index
    %c0_160 = arith.constant 0 : index
    %310 = vector.load %arg8[%c0_159, %c0_160] : memref<2x32xf32, #tpu.memory_space<vmem>>, vector<2x32xf32>
    %311 = arith.truncf %310 : vector<2x32xf32> to vector<2x32xbf16>
    %c0_161 = arith.constant 0 : index
    %c0_162 = arith.constant 0 : index
    %c0_163 = arith.constant 0 : index
    %312 = vector.load %arg3[%c0_161, %c0_162, %c0_163] : memref<1x32x128xbf16, #tpu.memory_space<vmem>>, vector<1x32x128xbf16>
    %313 = vector.shape_cast %312 : vector<1x32x128xbf16> to vector<32x128xbf16>
    %cst_164 = arith.constant dense<0.000000e+00> : vector<2x128xf32>
    %314 = tpu.matmul %311, %313, %cst_164 {dimension_numbers = #tpu.dot_dimension_numbers<[1], [0], [0], [1], [0, 0, 1, 1], [], []>} : vector<2x32xbf16>, vector<32x128xbf16>, vector<2x128xf32> -> vector<2x128xf32>
    %315 = arith.addf %309, %314 : vector<2x128xf32>
    %316 = vector.extract_strided_slice %315 {offsets = [0, 0], sizes = [2, 32], strides = [1, 1]} : vector<2x128xf32> to vector<2x32xf32>
    %317 = arith.negf %316 : vector<2x32xf32>
    %318 = math.exp %317 : vector<2x32xf32>
    %cst_165 = arith.constant 1.000000e+00 : f32
    %319 = vector.broadcast %cst_165 : f32 to vector<2x32xf32>
    %320 = arith.addf %319, %318 : vector<2x32xf32>
    %321 = arith.divf %319, %320 : vector<2x32xf32>
    %322 = vector.extract_strided_slice %315 {offsets = [0, 32], sizes = [2, 32], strides = [1, 1]} : vector<2x128xf32> to vector<2x32xf32>
    %323 = arith.negf %322 : vector<2x32xf32>
    %324 = math.exp %323 : vector<2x32xf32>
    %cst_166 = arith.constant 1.000000e+00 : f32
    %325 = vector.broadcast %cst_166 : f32 to vector<2x32xf32>
    %326 = arith.addf %325, %324 : vector<2x32xf32>
    %327 = arith.divf %325, %326 : vector<2x32xf32>
    %328 = vector.extract_strided_slice %315 {offsets = [0, 64], sizes = [2, 32], strides = [1, 1]} : vector<2x128xf32> to vector<2x32xf32>
    %329 = math.tanh %328 : vector<2x32xf32>
    %330 = vector.extract_strided_slice %315 {offsets = [0, 96], sizes = [2, 32], strides = [1, 1]} : vector<2x128xf32> to vector<2x32xf32>
    %331 = arith.negf %330 : vector<2x32xf32>
    %332 = math.exp %331 : vector<2x32xf32>
    %cst_167 = arith.constant 1.000000e+00 : f32
    %333 = vector.broadcast %cst_167 : f32 to vector<2x32xf32>
    %334 = arith.addf %333, %332 : vector<2x32xf32>
    %335 = arith.divf %333, %334 : vector<2x32xf32>
    %c0_168 = arith.constant 0 : index
    %c0_169 = arith.constant 0 : index
    %336 = vector.load %arg9[%c0_168, %c0_169] : memref<2x32xf32, #tpu.memory_space<vmem>>, vector<2x32xf32>
    %337 = arith.mulf %327, %336 : vector<2x32xf32>
    %338 = arith.mulf %321, %329 : vector<2x32xf32>
    %339 = arith.addf %337, %338 : vector<2x32xf32>
    %340 = math.tanh %339 : vector<2x32xf32>
    %341 = arith.mulf %335, %340 : vector<2x32xf32>
    %c0_170 = arith.constant 0 : index
    %c0_171 = arith.constant 0 : index
    %342 = vector.load %arg8[%c0_170, %c0_171] : memref<2x32xf32, #tpu.memory_space<vmem>>, vector<2x32xf32>
    tpu.vector_store %arg8[%c0_170, %c0_171], %341 {strides = array<i32>} : memref<2x32xf32, #tpu.memory_space<vmem>>, vector<2x32xf32>,
    %c0_172 = arith.constant 0 : index
    %c0_173 = arith.constant 0 : index
    %343 = vector.load %arg9[%c0_172, %c0_173] : memref<2x32xf32, #tpu.memory_space<vmem>>, vector<2x32xf32>
    tpu.vector_store %arg9[%c0_172, %c0_173], %339 {strides = array<i32>} : memref<2x32xf32, #tpu.memory_space<vmem>>, vector<2x32xf32>,
    %c0_174 = arith.constant 0 : index
    %344 = arith.index_cast %306 : i32 to index
    %c0_175 = arith.constant 0 : index
    %c0_176 = arith.constant 0 : index
    %345 = vector.load %arg6[%c0_174, %344, %c0_175, %c0_176] : memref<1x8x2x32xf32, #tpu.memory_space<vmem>>, vector<1x1x2x32xf32>
    %346 = vector.shape_cast %345 : vector<1x1x2x32xf32> to vector<2x32xf32>
    %347 = vector.shape_cast %341 : vector<2x32xf32> to vector<1x1x2x32xf32>
    tpu.vector_store %arg6[%c0_174, %344, %c0_175, %c0_176], %347 {strides = array<i32>} : memref<1x8x2x32xf32, #tpu.memory_space<vmem>>, vector<1x1x2x32xf32>,
    %c8_i32 = arith.constant 8 : i32
    %c0_i32_177 = arith.constant 0 : i32
    %348 = arith.cmpi eq, %arg1, %c0_i32_177 : i32
    %349 = arith.extui %348 : i1 to i32
    %c0_i32_178 = arith.constant 0 : i32
    %350 = arith.cmpi ne, %349, %c0_i32_178 : i32
    scf.if %350 {
      %c0_179 = arith.constant 0 : index
      %c0_180 = arith.constant 0 : index
      %351 = vector.load %arg9[%c0_179, %c0_180] : memref<2x32xf32, #tpu.memory_space<vmem>>, vector<2x32xf32>
      %c0_181 = arith.constant 0 : index
      %c0_182 = arith.constant 0 : index
      %c0_183 = arith.constant 0 : index
      %352 = vector.load %arg7[%c0_181, %c0_182, %c0_183] : memref<1x2x32xf32, #tpu.memory_space<vmem>>, vector<1x2x32xf32>
      %353 = vector.shape_cast %352 : vector<1x2x32xf32> to vector<2x32xf32>
      %354 = vector.shape_cast %351 : vector<2x32xf32> to vector<1x2x32xf32>
      tpu.vector_store %arg7[%c0_181, %c0_182, %c0_183], %354 {strides = array<i32>} : memref<1x2x32xf32, #tpu.memory_space<vmem>>, vector<1x2x32xf32>,
    } else {
    }
    return
  }
  func.func @transform_0(%arg0: i32, %arg1: i32) -> (i32, i32, i32, i32) {
    %c0_i32 = arith.constant 0 : i32
    %0 = arith.muli %arg0, %c0_i32 : i32
    %c2_i32 = arith.constant 2 : i32
    %1 = arith.muli %c2_i32, %arg0 : i32
    %c1_i32 = arith.constant 1 : i32
    %2 = arith.subi %c1_i32, %1 : i32
    %3 = arith.muli %2, %arg1 : i32
    %4 = arith.addi %0, %3 : i32
    %c0_i32_0 = arith.constant 0 : i32
    %c0_i32_1 = arith.constant 0 : i32
    %c0_i32_2 = arith.constant 0 : i32
    return %arg0, %4, %c0_i32_0, %c0_i32_1 : i32, i32, i32, i32
  }
  func.func @transform_1(%arg0: i32, %arg1: i32) -> (i32, i32, i32) {
    %c0_i32 = arith.constant 0 : i32
    %c0_i32_0 = arith.constant 0 : i32
    %c0_i32_1 = arith.constant 0 : i32
    return %arg0, %c0_i32, %c0_i32_0 : i32, i32, i32
  }
  func.func @transform_2(%arg0: i32, %arg1: i32) -> (i32, i32, i32) {
    %c0_i32 = arith.constant 0 : i32
    %c0_i32_0 = arith.constant 0 : i32
    %c0_i32_1 = arith.constant 0 : i32
    return %arg0, %c0_i32, %c0_i32_0 : i32, i32, i32
  }
  func.func @transform_3(%arg0: i32, %arg1: i32) -> (i32, i32, i32) {
    %c0_i32 = arith.constant 0 : i32
    %c0_i32_0 = arith.constant 0 : i32
    %c0_i32_1 = arith.constant 0 : i32
    return %arg0, %c0_i32, %c0_i32_0 : i32, i32, i32
  }
  func.func @transform_4(%arg0: i32, %arg1: i32) -> (i32, i32, i32, i32) {
    %c0_i32 = arith.constant 0 : i32
    %0 = arith.muli %arg0, %c0_i32 : i32
    %c2_i32 = arith.constant 2 : i32
    %1 = arith.muli %c2_i32, %arg0 : i32
    %c1_i32 = arith.constant 1 : i32
    %2 = arith.subi %c1_i32, %1 : i32
    %3 = arith.muli %2, %arg1 : i32
    %4 = arith.addi %0, %3 : i32
    %c0_i32_0 = arith.constant 0 : i32
    %c0_i32_1 = arith.constant 0 : i32
    %c0_i32_2 = arith.constant 0 : i32
    return %arg0, %4, %c0_i32_0, %c0_i32_1 : i32, i32, i32, i32
  }
  func.func @transform_5(%arg0: i32, %arg1: i32) -> (i32, i32, i32) {
    %c0_i32 = arith.constant 0 : i32
    %c0_i32_0 = arith.constant 0 : i32
    %c0_i32_1 = arith.constant 0 : i32
    return %arg0, %c0_i32, %c0_i32_0 : i32, i32, i32
  }
}

</mosaic_0001>

<llo_original>
// kernel: tpu_custom_call.1
$region0: #{tpu_custom_call.1}
  #allocation0 [shape = 'u32[]', space=smem, size = 0x4, offset = 0x4, fixed_abs, tag = 'smem constant byte address 0x4 - core index']
  #allocation1 [shape = 'u32[144,128]{1,0:T(1,128)}', space=vmem, size = 0x12000, scoped, tag = 'internal scratch']
  #allocation2 [shape = 'f32[2,32]{1,0:T(2,128)}', space=vmem, size = 0x400, scoped, tag = 'scratch operand']
  #allocation3 [shape = 'f32[2,32]{1,0:T(2,128)}', space=vmem, size = 0x400, scoped, tag = 'scratch operand']
  %s0 = inlined_call_operand.hbm [shape: f32[2,8,2,128], index: 0, kind: input, shape index: {}]
  %s1 = inlined_call_operand.hbm [shape: bf16[2,32,128], index: 1, kind: input, shape index: {}]
  %s2 = inlined_call_operand.vmem [shape: f32[2,2,32], index: 2, kind: input, shape index: {}]
  %s3 = inlined_call_operand.vmem [shape: f32[2,2,32], index: 3, kind: input, shape index: {}]
  %s4 = inlined_call_operand.hbm [shape: f32[2,8,2,32], index: 4, kind: output, shape index: {0}]
  %s5 = inlined_call_operand.hbm [shape: f32[2,2,32], index: 5, kind: output, shape index: {1}]
  %6 = xla_tuple %s4, %s5
  %s7 = sld [smem:[#allocation0]]
  $region73: #{tpu_custom_call.1} parent=0
    _
  %s9 = ssub.s32 1, %s7
  %s10 = scalar_select 0, %s9, %s7
  $region1: #{tpu_custom_call.1} parent=0
    #allocation4 [shape = 'u8[16384]{0}', space=vmem, size = 0x4000, scoped, tag = 'input window, operand 0']
    #allocation5 [shape = 's32[2]{0}', space=sflag, size = 0x8, scoped, tag = 'scoped memory for tpu_custom_call.1']
    #allocation6 [shape = 's32[2]{0}', space=sflag, size = 0x8, scoped, tag = 'scoped memory for tpu_custom_call.1']
    #allocation7 [shape = 'u8[16384]{0}', space=vmem, size = 0x4000, scoped, tag = 'input window, operand 1']
    #allocation8 [shape = 's32[2]{0}', space=sflag, size = 0x8, scoped, tag = 'scoped memory for tpu_custom_call.1']
    #allocation9 [shape = 'u8[16384]{0}', space=vmem, size = 0x4000, scoped, tag = 'output window, operand 0']
    #allocation10 [shape = 'u8[2048]{0}', space=vmem, size = 0x800, scoped, tag = 'output window, operand 1']
    #allocation11 [shape = 's32[2]{0}', space=sflag, size = 0x8, scoped, tag = 'scoped memory for tpu_custom_call.1']
    %11 = vsyncpa [#allocation5], 0
    %s12 = scalar_lea.sflag [#allocation5], 1
    %13 = vsyncpa %s12, 0
    %14 = vsyncpa [#allocation8], 0
    %s15 = scalar_lea.sflag [#allocation8], 1
    %16 = vsyncpa %s15, 0
    %17 = vsyncpa [#allocation6], 0
    %s18 = scalar_lea.sflag [#allocation6], 1
    %19 = vsyncpa %s18, 0
    %20 = vsyncpa [#allocation11], 0
    %s21 = scalar_lea.sflag [#allocation11], 1
    %22 = vsyncpa %s21, 0
    loop: start=0, step=1, limit=4
    $region2: #{tpu_custom_call.1} parent=1 // loop_pre_header
      _
    $region3: #{tpu_custom_call.1} parent=1 // loop_header
      %s24 = sphi 0, %s28
      %p25 = scmp.ge.s32.totalorder %s24, 4
      %s31 = sphi 0, %s43
      %s32 = sphi 0, %s39
      %s33 = sphi 0, %s31
      %s34 = sphi 0, %s32
      %s35 = sphi 0, %s33
      %s36 = sphi 0, %s34
      %s54 = sphi 0, %s56
      %s57 = sphi 0, %s54
      %s58 = sphi 0, %s57
      %s74 = sphi 0, %s58
      %s80 = sphi 0, %s82
      %s83 = sphi 0, %s80
      %s84 = sphi 0, %s83
      %s100 = sphi 0, %s84
      %s106 = sphi 0, %s108
      %s109 = sphi 0, %s106
      %s110 = sphi 0, %s109
      %s126 = sphi 0, %s110
      %s132 = sphi 0, %s134
      %s135 = sphi 0, %s132
      %s136 = sphi 0, %s135
      %s152 = sphi 0, %s136
      %s166 = sphi 0, %s168
      %s169 = sphi 0, %s166
      %s170 = sphi 0, %s169
      %s186 = sphi 0, %s170
      %s192 = sphi 0, %s194
      %s195 = sphi 0, %s192
      %s196 = sphi 0, %s195
      %s212 = sphi 0, %s196
    $region4: #{tpu_custom_call.1} parent=1 // loop_header_branch
      %27 = sbr.rel (%p25) target = $region8
    $region5: #{tpu_custom_call.1} parent=1 // loop_body
      %s29 = ssub.s32 %s24, 1
      %s30 = ssub.s32 %s24, 2
      %s37 = sadd.s32 1, %s32
      %p38 = scmp.ge.s32.totalorder %s37, 1
      %s39 = scalar_select %p38, 0, %s37
      %s40 = sadd.s32 1, %s31
      %s41 = scalar_select %p38, %s40, %s31
      %p42 = scmp.ge.s32.totalorder %s41, 2
      %s43 = scalar_select %p42, 0, %s41
      %s44 = smul.u32 %s31, 2
      %s45 = ssub.s32 1, %s44
      %s46 = smul.u32 %s45, %s32
      %s47 = smul.u32 %s43, 2
      %s48 = ssub.s32 1, %s47
      %s49 = smul.u32 %s48, %s39
      %s50 = ssub.s32 %s31, %s43
      %s51 = ssub.s32 %s46, %s49
      %s52 = sor.u32 %s50, %s51
      %p53 = scmp.eq.s32.totalorder %s52, 0
      %s55 = sadd.s32 %s54, 1
      %s56 = scalar_select %p53, %s54, %s55
      %p59 = pneg %p53
      %p60 = scmp.eq.s32.totalorder %s24, 1
      %p61 = por %p59, %p60
      %p62 = scmp.ne.s32.totalorder %s54, %s57
      %p63 = scmp.eq.s32.totalorder %s24, 0
      %p64 = por %p62, %p63
      %p65 = scmp.ne.s32.totalorder %s54, %s57
      %p66 = scmp.eq.s32.totalorder %s29, 1
      %p67 = por %p65, %p66
      %p68 = scmp.ne.s32.totalorder %s57, %s58
      %p69 = scmp.eq.s32.totalorder %s29, 0
      %p70 = por %p68, %p69
      %p71 = scmp.ne.s32.totalorder %s57, %s58
      %p72 = scmp.eq.s32.totalorder %s30, 1
      %p73 = por %p71, %p72
      %p75 = scmp.ne.s32.totalorder %s58, %s74
      %p76 = scmp.eq.s32.totalorder %s30, 0
      %p77 = por %p75, %p76
      %s78 = ssub.s32 %s31, %s43
      %p79 = scmp.eq.s32.totalorder %s78, 0
      %s81 = sadd.s32 %s80, 1
      %s82 = scalar_select %p79, %s80, %s81
      %p85 = pneg %p79
      %p86 = scmp.eq.s32.totalorder %s24, 1
      %p87 = por %p85, %p86
      %p88 = scmp.ne.s32.totalorder %s80, %s83
      %p89 = scmp.eq.s32.totalorder %s24, 0
      %p90 = por %p88, %p89
      %p91 = scmp.ne.s32.totalorder %s80, %s83
      %p92 = scmp.eq.s32.totalorder %s29, 1
      %p93 = por %p91, %p92
      %p94 = scmp.ne.s32.totalorder %s83, %s84
      %p95 = scmp.eq.s32.totalorder %s29, 0
      %p96 = por %p94, %p95
      %p97 = scmp.ne.s32.totalorder %s83, %s84
      %p98 = scmp.eq.s32.totalorder %s30, 1
      %p99 = por %p97, %p98
      %p101 = scmp.ne.s32.totalorder %s84, %s100
      %p102 = scmp.eq.s32.totalorder %s30, 0
      %p103 = por %p101, %p102
      %s104 = ssub.s32 %s31, %s43
      %p105 = scmp.eq.s32.totalorder %s104, 0
      %s107 = sadd.s32 %s106, 1
      %s108 = scalar_select %p105, %s106, %s107
      %p111 = pneg %p105
      %p112 = scmp.eq.s32.totalorder %s24, 1
      %p113 = por %p111, %p112
      %p114 = scmp.ne.s32.totalorder %s106, %s109
      %p115 = scmp.eq.s32.totalorder %s24, 0
      %p116 = por %p114, %p115
      %p117 = scmp.ne.s32.totalorder %s106, %s109
      %p118 = scmp.eq.s32.totalorder %s29, 1
      %p119 = por %p117, %p118
      %p120 = scmp.ne.s32.totalorder %s109, %s110
      %p121 = scmp.eq.s32.totalorder %s29, 0
      %p122 = por %p120, %p121
      %p123 = scmp.ne.s32.totalorder %s109, %s110
      %p124 = scmp.eq.s32.totalorder %s30, 1
      %p125 = por %p123, %p124
      %p127 = scmp.ne.s32.totalorder %s110, %s126
      %p128 = scmp.eq.s32.totalorder %s30, 0
      %p129 = por %p127, %p128
      %s130 = ssub.s32 %s31, %s43
      %p131 = scmp.eq.s32.totalorder %s130, 0
      %s133 = sadd.s32 %s132, 1
      %s134 = scalar_select %p131, %s132, %s133
      %p137 = pneg %p131
      %p138 = scmp.eq.s32.totalorder %s24, 1
      %p139 = por %p137, %p138
      %p140 = scmp.ne.s32.totalorder %s132, %s135
      %p141 = scmp.eq.s32.totalorder %s24, 0
      %p142 = por %p140, %p141
      %p143 = scmp.ne.s32.totalorder %s132, %s135
      %p144 = scmp.eq.s32.totalorder %s29, 1
      %p145 = por %p143, %p144
      %p146 = scmp.ne.s32.totalorder %s135, %s136
      %p147 = scmp.eq.s32.totalorder %s29, 0
      %p148 = por %p146, %p147
      %p149 = scmp.ne.s32.totalorder %s135, %s136
      %p150 = scmp.eq.s32.totalorder %s30, 1
      %p151 = por %p149, %p150
      %p153 = scmp.ne.s32.totalorder %s136, %s152
      %p154 = scmp.eq.s32.totalorder %s30, 0
      %p155 = por %p153, %p154
      %s156 = smul.u32 %s31, 2
      %s157 = ssub.s32 1, %s156
      %s158 = smul.u32 %s157, %s32
      %s159 = smul.u32 %s43, 2
      %s160 = ssub.s32 1, %s159
      %s161 = smul.u32 %s160, %s39
      %s162 = ssub.s32 %s31, %s43
      %s163 = ssub.s32 %s158, %s161
      %s164 = sor.u32 %s162, %s163
      %p165 = scmp.eq.s32.totalorder %s164, 0
      %s167 = sadd.s32 %s166, 1
      %s168 = scalar_select %p165, %s166, %s167
      %p171 = pneg %p165
      %p172 = scmp.eq.s32.totalorder %s24, 1
      %p173 = por %p171, %p172
      %p174 = scmp.ne.s32.totalorder %s166, %s169
      %p175 = scmp.eq.s32.totalorder %s24, 0
      %p176 = por %p174, %p175
      %p177 = scmp.ne.s32.totalorder %s166, %s169
      %p178 = scmp.eq.s32.totalorder %s29, 1
      %p179 = por %p177, %p178
      %p180 = scmp.ne.s32.totalorder %s169, %s170
      %p181 = scmp.eq.s32.totalorder %s29, 0
      %p182 = por %p180, %p181
      %p183 = scmp.ne.s32.totalorder %s169, %s170
      %p184 = scmp.eq.s32.totalorder %s30, 1
      %p185 = por %p183, %p184
      %p187 = scmp.ne.s32.totalorder %s170, %s186
      %p188 = scmp.eq.s32.totalorder %s30, 0
      %p189 = por %p187, %p188
      %s190 = ssub.s32 %s31, %s43
      %p191 = scmp.eq.s32.totalorder %s190, 0
      %s193 = sadd.s32 %s192, 1
      %s194 = scalar_select %p191, %s192, %s193
      %p197 = pneg %p191
      %p198 = scmp.eq.s32.totalorder %s24, 1
      %p199 = por %p197, %p198
      %p200 = scmp.ne.s32.totalorder %s192, %s195
      %p201 = scmp.eq.s32.totalorder %s24, 0
      %p202 = por %p200, %p201
      %p203 = scmp.ne.s32.totalorder %s192, %s195
      %p204 = scmp.eq.s32.totalorder %s29, 1
      %p205 = por %p203, %p204
      %p206 = scmp.ne.s32.totalorder %s195, %s196
      %p207 = scmp.eq.s32.totalorder %s29, 0
      %p208 = por %p206, %p207
      %p209 = scmp.ne.s32.totalorder %s195, %s196
      %p210 = scmp.eq.s32.totalorder %s30, 1
      %p211 = por %p209, %p210
      %p213 = scmp.ne.s32.totalorder %s196, %s212
      %p214 = scmp.eq.s32.totalorder %s30, 0
      %p215 = por %p213, %p214
      %p216 = scmp.le.s32.totalorder 1, %s24
      %p217 = scmp.lt.s32.totalorder %s24, 3
      %p218 = pnand %p216, %p217
      %p219 = pneg %p218
      // Predicated region
      $region9: #{tpu_custom_call.1} parent=5 // pred_check
        _
      $region10: #{tpu_custom_call.1} parent=5 // pred_check_branch
        %221 = sbr.rel (%p218) target = $region12
      $region11: #{tpu_custom_call.1} parent=5 // pred_region
        %s222 = ssub.s32 %s24, 1
      $region12: #{tpu_custom_call.1} parent=5 // pred_fallthru
        _
      %p223 = scmp.lt.s32.totalorder %s24, 2
      // Predicated region
      $region13: #{tpu_custom_call.1} parent=5 // pred_check
        %p224 = pneg %p223
      $region14: #{tpu_custom_call.1} parent=5 // pred_check_branch
        %226 = sbr.rel (%p224) target = $region16
      $region15: #{tpu_custom_call.1} parent=5 // pred_region
        // Predicated region
        $region17: #{tpu_custom_call.1} parent=15 // pred_check
          %p227 = pneg %p64
        $region18: #{tpu_custom_call.1} parent=15 // pred_check_branch
          %229 = sbr.rel (%p227) target = $region20
        $region19: #{tpu_custom_call.1} parent=15 // pred_region
          %s230 = sand.u32 %s54, 1
          %s231 = scalar_lea.sflag [#allocation5], %s230
          %s232 = sand.u32 %s54, 1
          %s233 = smul.addr %s232, 16
          %s234 = scalar_lea.vmem [#allocation4], %s233
          %s235 = smul.u32 %s31, 2
          %s236 = ssub.s32 1, %s235
          %s237 = smul.u32 %s236, %s32
          %s238 = smul.u32 8, %s237
          %s240 = ssub.s32 256, 256
          %241 = vsyncadd %s231, %s240
          %s242 = smul.addr %s31, 8
          %s243 = sadd.s32 %s238, %s242
          %s244 = smul.addr %s243, 32
          %s245 = scalar_lea.hbm %s0, %s244
          %s246 = sshll.u32 %s234, 4
          %s247 = int_to_ptr.vmem [resolvable:$true] %s246
          %252 = dma.hbm_to_vmem [thread:$0]  %s245, 256, %s247, %s231, 32, 32, 2
        $region20: #{tpu_custom_call.1} parent=15 // pred_fallthru
          _
        // Predicated region
        $region21: #{tpu_custom_call.1} parent=15 // pred_check
          %p253 = pneg %p90
        $region22: #{tpu_custom_call.1} parent=15 // pred_check_branch
          %255 = sbr.rel (%p253) target = $region24
        $region23: #{tpu_custom_call.1} parent=15 // pred_region
          %s256 = sand.u32 %s80, 1
          %s257 = scalar_lea.sflag [#allocation8], %s256
          %s258 = sand.u32 %s80, 1
          %s259 = smul.addr %s258, 16
          %s260 = scalar_lea.vmem [#allocation7], %s259
          %s262 = ssub.s32 256, 256
          %263 = vsyncadd %s257, %s262
          %s264 = smul.addr %s31, 4
          %s265 = smul.addr %s264, 64
          %s266 = scalar_lea.hbm %s1, %s265
          %s267 = sshll.u32 %s260, 4
          %s268 = int_to_ptr.vmem [resolvable:$true] %s267
          %273 = dma.hbm_to_vmem [thread:$0]  %s266, 256, %s268, %s257, 64, 64, 4
        $region24: #{tpu_custom_call.1} parent=15 // pred_fallthru
          _
        // Predicated region
        $region25: #{tpu_custom_call.1} parent=15 // pred_check
          %p274 = pneg %p116
        $region26: #{tpu_custom_call.1} parent=15 // pred_check_branch
          %276 = sbr.rel (%p274) target = $region28
        $region27: #{tpu_custom_call.1} parent=15 // pred_region
          %p277 = scmp.lt.s32.totalorder %s31, 1
          %s278 = scalar_select %p277, %s31, 1
          %s279 = smul.addr %s278, 2
          %s280 = scalar_lea.vmem %s2, %s279
        $region28: #{tpu_custom_call.1} parent=15 // pred_fallthru
          _
        // Predicated region
        $region29: #{tpu_custom_call.1} parent=15 // pred_check
          %p281 = pneg %p142
        $region30: #{tpu_custom_call.1} parent=15 // pred_check_branch
          %283 = sbr.rel (%p281) target = $region32
        $region31: #{tpu_custom_call.1} parent=15 // pred_region
          %p284 = scmp.lt.s32.totalorder %s31, 1
          %s285 = scalar_select %p284, %s31, 1
          %s286 = smul.addr %s285, 2
          %s287 = scalar_lea.vmem %s3, %s286
        $region32: #{tpu_custom_call.1} parent=15 // pred_fallthru
          _
      $region16: #{tpu_custom_call.1} parent=5 // pred_fallthru
        _
      %p288 = scmp.le.s32.totalorder 1, %s24
      %p289 = scmp.lt.s32.totalorder %s24, 3
      %p290 = pnand %p288, %p289
      %p291 = pneg %p290
      // Predicated region
      $region33: #{tpu_custom_call.1} parent=5 // pred_check
        _
      $region34: #{tpu_custom_call.1} parent=5 // pred_check_branch
        %293 = sbr.rel (%p290) target = $region36
      $region35: #{tpu_custom_call.1} parent=5 // pred_region
        %s294 = ssub.s32 %s24, 1
        %s295 = sand.u32 %s57, 1
        %s296 = scalar_lea.sflag [#allocation5], %s295
        %s297 = sand.u32 %s57, 1
        %s298 = smul.addr %s297, 16
        %s299 = scalar_lea.vmem [#allocation4], %s298
        // Predicated region
        $region37: #{tpu_custom_call.1} parent=35 // pred_check
          %p300 = pneg %p70
        $region38: #{tpu_custom_call.1} parent=35 // pred_check_branch
          %302 = sbr.rel (%p300) target = $region40
        $region39: #{tpu_custom_call.1} parent=35 // pred_region
          %303 = dma.done %s296, 256
        $region40: #{tpu_custom_call.1} parent=35 // pred_fallthru
          _
        %s304 = sand.u32 %s83, 1
        %s305 = scalar_lea.sflag [#allocation8], %s304
        %s306 = sand.u32 %s83, 1
        %s307 = smul.addr %s306, 16
        %s308 = scalar_lea.vmem [#allocation7], %s307
        // Predicated region
        $region41: #{tpu_custom_call.1} parent=35 // pred_check
          %p309 = pneg %p96
        $region42: #{tpu_custom_call.1} parent=35 // pred_check_branch
          %311 = sbr.rel (%p309) target = $region44
        $region43: #{tpu_custom_call.1} parent=35 // pred_region
          %312 = dma.done %s305, 256
        $region44: #{tpu_custom_call.1} parent=35 // pred_fallthru
          _
        %s313 = sand.u32 %s57, 1
        %s314 = scalar_lea.sflag [#allocation5], %s313
        %s315 = sand.u32 %s57, 1
        %s316 = smul.addr %s315, 16
        %s317 = scalar_lea.vmem [#allocation4], %s316
        %p318 = pneg %p70
        %p319 = pneg %p67
        %s320 = sand.u32 %s83, 1
        %s321 = scalar_lea.sflag [#allocation8], %s320
        %s322 = sand.u32 %s83, 1
        %s323 = smul.addr %s322, 16
        %s324 = scalar_lea.vmem [#allocation7], %s323
        %p325 = pneg %p96
        %p326 = pneg %p93
        %p327 = scmp.lt.s32.totalorder %s33, 1
        %s328 = scalar_select %p327, %s33, 1
        %s329 = smul.addr %s328, 2
        %s330 = scalar_lea.vmem %s2, %s329
        %p331 = pneg %p122
        %p332 = pneg %p119
        %p333 = scmp.lt.s32.totalorder %s33, 1
        %s334 = scalar_select %p333, %s33, 1
        %s335 = smul.addr %s334, 2
        %s336 = scalar_lea.vmem %s3, %s335
        %p337 = pneg %p148
        %p338 = pneg %p145
        %p339 = pneg %p182
        %p340 = pneg %p179
        %s341 = sand.u32 %s169, 1
        %s342 = scalar_lea.sflag [#allocation6], %s341
        %s343 = sand.u32 %s169, 1
        %s344 = smul.addr %s343, 16
        %s345 = scalar_lea.vmem [#allocation9], %s344
        %p346 = pneg %p208
        %p347 = pneg %p205
        %s348 = sand.u32 %s195, 1
        %s349 = scalar_lea.sflag [#allocation11], %s348
        %s350 = sand.u32 %s195, 1
        %s351 = smul.addr %s350, 2
        %s352 = scalar_lea.vmem [#allocation10], %s351
        %s353 = smul.u32 %s33, 2
        %s354 = ssub.s32 1, %s353
        %s355 = smul.u32 %s354, %s34
        %s356 = smul.u32 8, %s355
        %p357 = scmp.lt.s32.totalorder %s33, 1
        %s358 = scalar_select %p357, %s33, 1
        %s359 = smul.addr %s358, 2
        %s360 = scalar_lea.vmem %s2, %s359
        %p361 = scmp.lt.s32.totalorder %s33, 1
        %s362 = scalar_select %p361, %s33, 1
        %s363 = smul.addr %s362, 2
        %s364 = scalar_lea.vmem %s3, %s363
        %s365 = smul.u32 %s33, 2
        %s366 = ssub.s32 1, %s365
        %s367 = smul.u32 %s366, %s34
        %s368 = smul.u32 8, %s367
        %p370 = scmp.eq.s32.totalorder %s34, 0
        // Predicated region
        $region45: #{tpu_custom_call.1} parent=35 // pred_check
          %p371 = pneg %p370
        $region46: #{tpu_custom_call.1} parent=35 // pred_check_branch
          %373 = sbr.rel (%p371) target = $region48
        $region47: #{tpu_custom_call.1} parent=35 // pred_region
          %v374 = vld [vmem:[%s360] sm:$0x3]
          %vm375 = vcmask 254976
          %376 = vst.msk [vmem:[#allocation2] sm:$0x3] %vm375, %v374
          %v377 = vld [vmem:[%s364] sm:$0x3]
          %378 = vst.msk [vmem:[#allocation3] sm:$0x3] %vm375, %v377
        $region48: #{tpu_custom_call.1} parent=35 // pred_fallthru
          _
        %p379 = scmp.eq.s32.totalorder %s33, 1
        %s380 = scalar_select %p379, 7, 0
        %s381 = smul.u32 %s380, 2
        %s382 = scalar_lea.vmem %s299, %s381 [#allocation4]
        %v383 = vld [vmem:[%s382] sm:$0x3]
        %v384 = vld [vmem:[#allocation2] sm:$0x3]
        %v385 = vpack.c.bf16 %v384, %v384
        %v386 = vld [vmem:[%s308] sm:$0xf]
        %v387 = vld [vmem:[%s308 + $0x4] sm:$0xf]
        %v388 = vld [vmem:[%s308 + $0x8] sm:$0xf]
        %v389 = vld [vmem:[%s308 + $0xc] sm:$0xf]
        %v394 = vunpack.c.l.b16 %v386
        %v395 = vunpack.c.l.b16 %v387
        %v396 = vunpack.c.l.b16 %v388
        %v397 = vunpack.c.l.b16 %v389
        %v398 = vpack.c.b16 %v395, %v394
        %v399 = vpack.c.b16 %v397, %v396
        %vm402 = vcmask 261120
        %v404 = vsel %vm402, %v385, 0
        %406 = vmatprep.subr.bf16.mxu0 0
        %407 = vmatpush1.bf16.msra.mxu0 %v398
        %408 = vmatprep.subr.bf16.mxu0 0
        %409 = vmatpush1.bf16.msra.mxu0 %v399
        %410 = vmatprep.subr.bf16.mxu0 0
        %411 = vmatpush1.bf16.msra.mxu0 0
        %412 = vmatprep.subr.bf16.mxu0 0
        %413 = vmatpush1.bf16.msra.mxu0 0
        %414 = vmatprep.subr.bf16.mxu0 0
        %415 = vmatpush1.bf16.msra.mxu0 0
        %416 = vmatprep.subr.bf16.mxu0 0
        %417 = vmatpush1.bf16.msra.mxu0 0
        %418 = vmatprep.subr.bf16.mxu0 0
        %419 = vmatpush1.bf16.msra.mxu0 0
        %420 = vmatprep.subr.bf16.mxu0 0
        %421 = vmatpush1.bf16.msra.mxu0 0
        %422 = vmatprep.subr.bf16.mxu0 0
        %423 = vmatpush1.bf16.msra.mxu0 0
        %424 = vmatprep.subr.bf16.mxu0 0
        %425 = vmatpush1.bf16.msra.mxu0 0
        %426 = vmatprep.subr.bf16.mxu0 0
        %427 = vmatpush1.bf16.msra.mxu0 0
        %428 = vmatprep.subr.bf16.mxu0 0
        %429 = vmatpush1.bf16.msra.mxu0 0
        %430 = vmatprep.subr.bf16.mxu0 0
        %431 = vmatpush1.bf16.msra.mxu0 0
        %432 = vmatprep.subr.bf16.mxu0 0
        %433 = vmatpush1.bf16.msra.mxu0 0
        %434 = vmatprep.subr.bf16.mxu0 0
        %435 = vmatpush1.bf16.msra.mxu0 0
        %436 = vmatprep.subr.bf16.mxu0 0
        %437 = vmatpush1.bf16.msra.mxu0 0
        %438 = vmatprep.mubr.bf16.mxu0 0
        %439 = vmatmul.mubr.bf16.gmra.mrb[0].mxu0 %v404
        %v440 = vpop.f32.mrb[0].mxu0
        %v441 = vadd.f32 0.0, %v440
        %v442 = vpop.f32.mrb[0].mxu0
        %v443 = vpop.f32.mrb[0].mxu0
        %v444 = vpop.f32.mrb[0].mxu0
        %445 = vdwg.mxu0
        %v446 = vadd.f32 %v383, %v441
        %v447 = vxor.u32 %v446, 2147483648
        %v448 = vmul.f32 %v447, 1.442695
        %v449 = vpow.pop %v448
        %v450 = vadd.f32 %v449, 1.0
        %v451 = vrcp.pop %v450
        %v452 = vmul.f32 1.0, %v451
        %v453 = vtanh.pop %v446
        %v454 = vld [vmem:[#allocation3] sm:$0x3]
        %456 = vrot.lane.b32.xlu0 %v454, 32
        %v457 = vpop.permute.xlu0 %456
        %v459 = vmul.f32 %v452, %v457
        %461 = vrot.lane.b32.xlu0 %v453, 64
        %v462 = vpop.permute.xlu0 %461
        %v464 = vmul.f32 %v452, %v462
        %466 = vrot.lane.b32.xlu0 %v464, 32
        %v467 = vpop.permute.xlu0 %466
        %v469 = vadd.f32 %v459, %v467
        %v470 = vtanh.pop %v469
        %472 = vrot.lane.b32.xlu0 %v470, 64
        %v473 = vpop.permute.xlu0 %472
        %v475 = vmul.f32 %v452, %v473
        %477 = vrot.lane.b32.xlu0 %v475, 32
        %v478 = vpop.permute.xlu0 %477
        %vm480 = vcmask 254976
        %481 = vst.msk [vmem:[#allocation2] sm:$0x3] %vm480, %v478
        %483 = vrot.lane.b32.xlu0 %v469, 96
        %v484 = vpop.permute.xlu0 %483
        %486 = vst.msk [vmem:[#allocation3] sm:$0x3] %vm480, %v484
        %s487 = scalar_lea.vmem %s345, %s381 [#allocation9]
        %488 = vst.msk [vmem:[%s487] sm:$0x3] %vm480, %v478
        %s489 = scalar_select %p379, 6, 1
        %s490 = smul.u32 %s489, 2
        %s491 = scalar_lea.vmem %s299, %s490 [#allocation4]
        %v492 = vld [vmem:[%s491] sm:$0x3]
        %v493 = vld [vmem:[#allocation2] sm:$0x3]
        %v494 = vpack.c.bf16 %v493, %v493
        %v495 = vld [vmem:[%s308] sm:$0xf]
        %v496 = vld [vmem:[%s308 + $0x4] sm:$0xf]
        %v497 = vld [vmem:[%s308 + $0x8] sm:$0xf]
        %v498 = vld [vmem:[%s308 + $0xc] sm:$0xf]
        %v503 = vunpack.c.l.b16 %v495
        %v504 = vunpack.c.l.b16 %v496
        %v505 = vunpack.c.l.b16 %v497
        %v506 = vunpack.c.l.b16 %v498
        %v507 = vpack.c.b16 %v504, %v503
        %v508 = vpack.c.b16 %v506, %v505
        %v512 = vsel %vm402, %v494, 0
        %514 = vmatprep.subr.bf16.mxu0 0
        %515 = vmatpush1.bf16.msra.mxu0 %v507
        %516 = vmatprep.subr.bf16.mxu0 0
        %517 = vmatpush1.bf16.msra.mxu0 %v508
        %518 = vmatprep.subr.bf16.mxu0 0
        %519 = vmatpush1.bf16.msra.mxu0 0
        %520 = vmatprep.subr.bf16.mxu0 0
        %521 = vmatpush1.bf16.msra.mxu0 0
        %522 = vmatprep.subr.bf16.mxu0 0
        %523 = vmatpush1.bf16.msra.mxu0 0
        %524 = vmatprep.subr.bf16.mxu0 0
        %525 = vmatpush1.bf16.msra.mxu0 0
        %526 = vmatprep.subr.bf16.mxu0 0
        %527 = vmatpush1.bf16.msra.mxu0 0
        %528 = vmatprep.subr.bf16.mxu0 0
        %529 = vmatpush1.bf16.msra.mxu0 0
        %530 = vmatprep.subr.bf16.mxu0 0
        %531 = vmatpush1.bf16.msra.mxu0 0
        %532 = vmatprep.subr.bf16.mxu0 0
        %533 = vmatpush1.bf16.msra.mxu0 0
        %534 = vmatprep.subr.bf16.mxu0 0
        %535 = vmatpush1.bf16.msra.mxu0 0
        %536 = vmatprep.subr.bf16.mxu0 0
        %537 = vmatpush1.bf16.msra.mxu0 0
        %538 = vmatprep.subr.bf16.mxu0 0
        %539 = vmatpush1.bf16.msra.mxu0 0
        %540 = vmatprep.subr.bf16.mxu0 0
        %541 = vmatpush1.bf16.msra.mxu0 0
        %542 = vmatprep.subr.bf16.mxu0 0
        %543 = vmatpush1.bf16.msra.mxu0 0
        %544 = vmatprep.subr.bf16.mxu0 0
        %545 = vmatpush1.bf16.msra.mxu0 0
        %546 = vmatprep.mubr.bf16.mxu0 0
        %547 = vmatmul.mubr.bf16.gmra.mrb[0].mxu0 %v512
        %v548 = vpop.f32.mrb[0].mxu0
        %v549 = vadd.f32 0.0, %v548
        %v550 = vpop.f32.mrb[0].mxu0
        %v551 = vpop.f32.mrb[0].mxu0
        %v552 = vpop.f32.mrb[0].mxu0
        %553 = vdwg.mxu0
        %v554 = vadd.f32 %v492, %v549
        %v555 = vxor.u32 %v554, 2147483648
        %v556 = vmul.f32 %v555, 1.442695
        %v557 = vpow.pop %v556
        %v558 = vadd.f32 %v557, 1.0
        %v559 = vrcp.pop %v558
        %v560 = vmul.f32 1.0, %v559
        %v561 = vtanh.pop %v554
        %v562 = vld [vmem:[#allocation3] sm:$0x3]
        %564 = vrot.lane.b32.xlu0 %v562, 32
        %v565 = vpop.permute.xlu0 %564
        %v567 = vmul.f32 %v560, %v565
        %569 = vrot.lane.b32.xlu0 %v561, 64
        %v570 = vpop.permute.xlu0 %569
        %v572 = vmul.f32 %v560, %v570
        %574 = vrot.lane.b32.xlu0 %v572, 32
        %v575 = vpop.permute.xlu0 %574
        %v577 = vadd.f32 %v567, %v575
        %v578 = vtanh.pop %v577
        %580 = vrot.lane.b32.xlu0 %v578, 64
        %v581 = vpop.permute.xlu0 %580
        %v583 = vmul.f32 %v560, %v581
        %585 = vrot.lane.b32.xlu0 %v583, 32
        %v586 = vpop.permute.xlu0 %585
        %588 = vst.msk [vmem:[#allocation2] sm:$0x3] %vm480, %v586
        %590 = vrot.lane.b32.xlu0 %v577, 96
        %v591 = vpop.permute.xlu0 %590
        %593 = vst.msk [vmem:[#allocation3] sm:$0x3] %vm480, %v591
        %s594 = scalar_lea.vmem %s345, %s490 [#allocation9]
        %595 = vst.msk [vmem:[%s594] sm:$0x3] %vm480, %v586
        %s596 = scalar_select %p379, 5, 2
        %s597 = smul.u32 %s596, 2
        %s598 = scalar_lea.vmem %s299, %s597 [#allocation4]
        %v599 = vld [vmem:[%s598] sm:$0x3]
        %v600 = vld [vmem:[#allocation2] sm:$0x3]
        %v601 = vpack.c.bf16 %v600, %v600
        %v602 = vld [vmem:[%s308] sm:$0xf]
        %v603 = vld [vmem:[%s308 + $0x4] sm:$0xf]
        %v604 = vld [vmem:[%s308 + $0x8] sm:$0xf]
        %v605 = vld [vmem:[%s308 + $0xc] sm:$0xf]
        %v610 = vunpack.c.l.b16 %v602
        %v611 = vunpack.c.l.b16 %v603
        %v612 = vunpack.c.l.b16 %v604
        %v613 = vunpack.c.l.b16 %v605
        %v614 = vpack.c.b16 %v611, %v610
        %v615 = vpack.c.b16 %v613, %v612
        %v619 = vsel %vm402, %v601, 0
        %621 = vmatprep.subr.bf16.mxu0 0
        %622 = vmatpush1.bf16.msra.mxu0 %v614
        %623 = vmatprep.subr.bf16.mxu0 0
        %624 = vmatpush1.bf16.msra.mxu0 %v615
        %625 = vmatprep.subr.bf16.mxu0 0
        %626 = vmatpush1.bf16.msra.mxu0 0
        %627 = vmatprep.subr.bf16.mxu0 0
        %628 = vmatpush1.bf16.msra.mxu0 0
        %629 = vmatprep.subr.bf16.mxu0 0
        %630 = vmatpush1.bf16.msra.mxu0 0
        %631 = vmatprep.subr.bf16.mxu0 0
        %632 = vmatpush1.bf16.msra.mxu0 0
        %633 = vmatprep.subr.bf16.mxu0 0
        %634 = vmatpush1.bf16.msra.mxu0 0
        %635 = vmatprep.subr.bf16.mxu0 0
        %636 = vmatpush1.bf16.msra.mxu0 0
        %637 = vmatprep.subr.bf16.mxu0 0
        %638 = vmatpush1.bf16.msra.mxu0 0
        %639 = vmatprep.subr.bf16.mxu0 0
        %640 = vmatpush1.bf16.msra.mxu0 0
        %641 = vmatprep.subr.bf16.mxu0 0
        %642 = vmatpush1.bf16.msra.mxu0 0
        %643 = vmatprep.subr.bf16.mxu0 0
        %644 = vmatpush1.bf16.msra.mxu0 0
        %645 = vmatprep.subr.bf16.mxu0 0
        %646 = vmatpush1.bf16.msra.mxu0 0
        %647 = vmatprep.subr.bf16.mxu0 0
        %648 = vmatpush1.bf16.msra.mxu0 0
        %649 = vmatprep.subr.bf16.mxu0 0
        %650 = vmatpush1.bf16.msra.mxu0 0
        %651 = vmatprep.subr.bf16.mxu0 0
        %652 = vmatpush1.bf16.msra.mxu0 0
        %653 = vmatprep.mubr.bf16.mxu0 0
        %654 = vmatmul.mubr.bf16.gmra.mrb[0].mxu0 %v619
        %v655 = vpop.f32.mrb[0].mxu0
        %v656 = vadd.f32 0.0, %v655
        %v657 = vpop.f32.mrb[0].mxu0
        %v658 = vpop.f32.mrb[0].mxu0
        %v659 = vpop.f32.mrb[0].mxu0
        %660 = vdwg.mxu0
        %v661 = vadd.f32 %v599, %v656
        %v662 = vxor.u32 %v661, 2147483648
        %v663 = vmul.f32 %v662, 1.442695
        %v664 = vpow.pop %v663
        %v665 = vadd.f32 %v664, 1.0
        %v666 = vrcp.pop %v665
        %v667 = vmul.f32 1.0, %v666
        %v668 = vtanh.pop %v661
        %v669 = vld [vmem:[#allocation3] sm:$0x3]
        %671 = vrot.lane.b32.xlu0 %v669, 32
        %v672 = vpop.permute.xlu0 %671
        %v674 = vmul.f32 %v667, %v672
        %676 = vrot.lane.b32.xlu0 %v668, 64
        %v677 = vpop.permute.xlu0 %676
        %v679 = vmul.f32 %v667, %v677
        %681 = vrot.lane.b32.xlu0 %v679, 32
        %v682 = vpop.permute.xlu0 %681
        %v684 = vadd.f32 %v674, %v682
        %v685 = vtanh.pop %v684
        %687 = vrot.lane.b32.xlu0 %v685, 64
        %v688 = vpop.permute.xlu0 %687
        %v690 = vmul.f32 %v667, %v688
        %692 = vrot.lane.b32.xlu0 %v690, 32
        %v693 = vpop.permute.xlu0 %692
        %695 = vst.msk [vmem:[#allocation2] sm:$0x3] %vm480, %v693
        %697 = vrot.lane.b32.xlu0 %v684, 96
        %v698 = vpop.permute.xlu0 %697
        %700 = vst.msk [vmem:[#allocation3] sm:$0x3] %vm480, %v698
        %s701 = scalar_lea.vmem %s345, %s597 [#allocation9]
        %702 = vst.msk [vmem:[%s701] sm:$0x3] %vm480, %v693
        %s703 = scalar_select %p379, 4, 3
        %s704 = smul.u32 %s703, 2
        %s705 = scalar_lea.vmem %s299, %s704 [#allocation4]
        %v706 = vld [vmem:[%s705] sm:$0x3]
        %v707 = vld [vmem:[#allocation2] sm:$0x3]
        %v708 = vpack.c.bf16 %v707, %v707
        %v709 = vld [vmem:[%s308] sm:$0xf]
        %v710 = vld [vmem:[%s308 + $0x4] sm:$0xf]
        %v711 = vld [vmem:[%s308 + $0x8] sm:$0xf]
        %v712 = vld [vmem:[%s308 + $0xc] sm:$0xf]
        %v717 = vunpack.c.l.b16 %v709
        %v718 = vunpack.c.l.b16 %v710
        %v719 = vunpack.c.l.b16 %v711
        %v720 = vunpack.c.l.b16 %v712
        %v721 = vpack.c.b16 %v718, %v717
        %v722 = vpack.c.b16 %v720, %v719
        %v726 = vsel %vm402, %v708, 0
        %728 = vmatprep.subr.bf16.mxu0 0
        %729 = vmatpush1.bf16.msra.mxu0 %v721
        %730 = vmatprep.subr.bf16.mxu0 0
        %731 = vmatpush1.bf16.msra.mxu0 %v722
        %732 = vmatprep.subr.bf16.mxu0 0
        %733 = vmatpush1.bf16.msra.mxu0 0
        %734 = vmatprep.subr.bf16.mxu0 0
        %735 = vmatpush1.bf16.msra.mxu0 0
        %736 = vmatprep.subr.bf16.mxu0 0
        %737 = vmatpush1.bf16.msra.mxu0 0
        %738 = vmatprep.subr.bf16.mxu0 0
        %739 = vmatpush1.bf16.msra.mxu0 0
        %740 = vmatprep.subr.bf16.mxu0 0
        %741 = vmatpush1.bf16.msra.mxu0 0
        %742 = vmatprep.subr.bf16.mxu0 0
        %743 = vmatpush1.bf16.msra.mxu0 0
        %744 = vmatprep.subr.bf16.mxu0 0
        %745 = vmatpush1.bf16.msra.mxu0 0
        %746 = vmatprep.subr.bf16.mxu0 0
        %747 = vmatpush1.bf16.msra.mxu0 0
        %748 = vmatprep.subr.bf16.mxu0 0
        %749 = vmatpush1.bf16.msra.mxu0 0
        %750 = vmatprep.subr.bf16.mxu0 0
        %751 = vmatpush1.bf16.msra.mxu0 0
        %752 = vmatprep.subr.bf16.mxu0 0
        %753 = vmatpush1.bf16.msra.mxu0 0
        %754 = vmatprep.subr.bf16.mxu0 0
        %755 = vmatpush1.bf16.msra.mxu0 0
        %756 = vmatprep.subr.bf16.mxu0 0
        %757 = vmatpush1.bf16.msra.mxu0 0
        %758 = vmatprep.subr.bf16.mxu0 0
        %759 = vmatpush1.bf16.msra.mxu0 0
        %760 = vmatprep.mubr.bf16.mxu0 0
        %761 = vmatmul.mubr.bf16.gmra.mrb[0].mxu0 %v726
        %v762 = vpop.f32.mrb[0].mxu0
        %v763 = vadd.f32 0.0, %v762
        %v764 = vpop.f32.mrb[0].mxu0
        %v765 = vpop.f32.mrb[0].mxu0
        %v766 = vpop.f32.mrb[0].mxu0
        %767 = vdwg.mxu0
        %v768 = vadd.f32 %v706, %v763
        %v769 = vxor.u32 %v768, 2147483648
        %v770 = vmul.f32 %v769, 1.442695
        %v771 = vpow.pop %v770
        %v772 = vadd.f32 %v771, 1.0
        %v773 = vrcp.pop %v772
        %v774 = vmul.f32 1.0, %v773
        %v775 = vtanh.pop %v768
        %v776 = vld [vmem:[#allocation3] sm:$0x3]
        %778 = vrot.lane.b32.xlu0 %v776, 32
        %v779 = vpop.permute.xlu0 %778
        %v781 = vmul.f32 %v774, %v779
        %783 = vrot.lane.b32.xlu0 %v775, 64
        %v784 = vpop.permute.xlu0 %783
        %v786 = vmul.f32 %v774, %v784
        %788 = vrot.lane.b32.xlu0 %v786, 32
        %v789 = vpop.permute.xlu0 %788
        %v791 = vadd.f32 %v781, %v789
        %v792 = vtanh.pop %v791
        %794 = vrot.lane.b32.xlu0 %v792, 64
        %v795 = vpop.permute.xlu0 %794
        %v797 = vmul.f32 %v774, %v795
        %799 = vrot.lane.b32.xlu0 %v797, 32
        %v800 = vpop.permute.xlu0 %799
        %802 = vst.msk [vmem:[#allocation2] sm:$0x3] %vm480, %v800
        %804 = vrot.lane.b32.xlu0 %v791, 96
        %v805 = vpop.permute.xlu0 %804
        %807 = vst.msk [vmem:[#allocation3] sm:$0x3] %vm480, %v805
        %s808 = scalar_lea.vmem %s345, %s704 [#allocation9]
        %809 = vst.msk [vmem:[%s808] sm:$0x3] %vm480, %v800
        %s810 = scalar_select %p379, 3, 4
        %s811 = smul.u32 %s810, 2
        %s812 = scalar_lea.vmem %s299, %s811 [#allocation4]
        %v813 = vld [vmem:[%s812] sm:$0x3]
        %v814 = vld [vmem:[#allocation2] sm:$0x3]
        %v815 = vpack.c.bf16 %v814, %v814
        %v816 = vld [vmem:[%s308] sm:$0xf]
        %v817 = vld [vmem:[%s308 + $0x4] sm:$0xf]
        %v818 = vld [vmem:[%s308 + $0x8] sm:$0xf]
        %v819 = vld [vmem:[%s308 + $0xc] sm:$0xf]
        %v824 = vunpack.c.l.b16 %v816
        %v825 = vunpack.c.l.b16 %v817
        %v826 = vunpack.c.l.b16 %v818
        %v827 = vunpack.c.l.b16 %v819
        %v828 = vpack.c.b16 %v825, %v824
        %v829 = vpack.c.b16 %v827, %v826
        %v833 = vsel %vm402, %v815, 0
        %835 = vmatprep.subr.bf16.mxu0 0
        %836 = vmatpush1.bf16.msra.mxu0 %v828
        %837 = vmatprep.subr.bf16.mxu0 0
        %838 = vmatpush1.bf16.msra.mxu0 %v829
        %839 = vmatprep.subr.bf16.mxu0 0
        %840 = vmatpush1.bf16.msra.mxu0 0
        %841 = vmatprep.subr.bf16.mxu0 0
        %842 = vmatpush1.bf16.msra.mxu0 0
        %843 = vmatprep.subr.bf16.mxu0 0
        %844 = vmatpush1.bf16.msra.mxu0 0
        %845 = vmatprep.subr.bf16.mxu0 0
        %846 = vmatpush1.bf16.msra.mxu0 0
        %847 = vmatprep.subr.bf16.mxu0 0
        %848 = vmatpush1.bf16.msra.mxu0 0
        %849 = vmatprep.subr.bf16.mxu0 0
        %850 = vmatpush1.bf16.msra.mxu0 0
        %851 = vmatprep.subr.bf16.mxu0 0
        %852 = vmatpush1.bf16.msra.mxu0 0
        %853 = vmatprep.subr.bf16.mxu0 0
        %854 = vmatpush1.bf16.msra.mxu0 0
        %855 = vmatprep.subr.bf16.mxu0 0
        %856 = vmatpush1.bf16.msra.mxu0 0
        %857 = vmatprep.subr.bf16.mxu0 0
        %858 = vmatpush1.bf16.msra.mxu0 0
        %859 = vmatprep.subr.bf16.mxu0 0
        %860 = vmatpush1.bf16.msra.mxu0 0
        %861 = vmatprep.subr.bf16.mxu0 0
        %862 = vmatpush1.bf16.msra.mxu0 0
        %863 = vmatprep.subr.bf16.mxu0 0
        %864 = vmatpush1.bf16.msra.mxu0 0
        %865 = vmatprep.subr.bf16.mxu0 0
        %866 = vmatpush1.bf16.msra.mxu0 0
        %867 = vmatprep.mubr.bf16.mxu0 0
        %868 = vmatmul.mubr.bf16.gmra.mrb[0].mxu0 %v833
        %v869 = vpop.f32.mrb[0].mxu0
        %v870 = vadd.f32 0.0, %v869
        %v871 = vpop.f32.mrb[0].mxu0
        %v872 = vpop.f32.mrb[0].mxu0
        %v873 = vpop.f32.mrb[0].mxu0
        %874 = vdwg.mxu0
        %v875 = vadd.f32 %v813, %v870
        %v876 = vxor.u32 %v875, 2147483648
        %v877 = vmul.f32 %v876, 1.442695
        %v878 = vpow.pop %v877
        %v879 = vadd.f32 %v878, 1.0
        %v880 = vrcp.pop %v879
        %v881 = vmul.f32 1.0, %v880
        %v882 = vtanh.pop %v875
        %v883 = vld [vmem:[#allocation3] sm:$0x3]
        %885 = vrot.lane.b32.xlu0 %v883, 32
        %v886 = vpop.permute.xlu0 %885
        %v888 = vmul.f32 %v881, %v886
        %890 = vrot.lane.b32.xlu0 %v882, 64
        %v891 = vpop.permute.xlu0 %890
        %v893 = vmul.f32 %v881, %v891
        %895 = vrot.lane.b32.xlu0 %v893, 32
        %v896 = vpop.permute.xlu0 %895
        %v898 = vadd.f32 %v888, %v896
        %v899 = vtanh.pop %v898
        %901 = vrot.lane.b32.xlu0 %v899, 64
        %v902 = vpop.permute.xlu0 %901
        %v904 = vmul.f32 %v881, %v902
        %906 = vrot.lane.b32.xlu0 %v904, 32
        %v907 = vpop.permute.xlu0 %906
        %909 = vst.msk [vmem:[#allocation2] sm:$0x3] %vm480, %v907
        %911 = vrot.lane.b32.xlu0 %v898, 96
        %v912 = vpop.permute.xlu0 %911
        %914 = vst.msk [vmem:[#allocation3] sm:$0x3] %vm480, %v912
        %s915 = scalar_lea.vmem %s345, %s811 [#allocation9]
        %916 = vst.msk [vmem:[%s915] sm:$0x3] %vm480, %v907
        %s917 = scalar_select %p379, 2, 5
        %s918 = smul.u32 %s917, 2
        %s919 = scalar_lea.vmem %s299, %s918 [#allocation4]
        %v920 = vld [vmem:[%s919] sm:$0x3]
        %v921 = vld [vmem:[#allocation2] sm:$0x3]
        %v922 = vpack.c.bf16 %v921, %v921
        %v923 = vld [vmem:[%s308] sm:$0xf]
        %v924 = vld [vmem:[%s308 + $0x4] sm:$0xf]
        %v925 = vld [vmem:[%s308 + $0x8] sm:$0xf]
        %v926 = vld [vmem:[%s308 + $0xc] sm:$0xf]
        %v931 = vunpack.c.l.b16 %v923
        %v932 = vunpack.c.l.b16 %v924
        %v933 = vunpack.c.l.b16 %v925
        %v934 = vunpack.c.l.b16 %v926
        %v935 = vpack.c.b16 %v932, %v931
        %v936 = vpack.c.b16 %v934, %v933
        %v940 = vsel %vm402, %v922, 0
        %942 = vmatprep.subr.bf16.mxu0 0
        %943 = vmatpush1.bf16.msra.mxu0 %v935
        %944 = vmatprep.subr.bf16.mxu0 0
        %945 = vmatpush1.bf16.msra.mxu0 %v936
        %946 = vmatprep.subr.bf16.mxu0 0
        %947 = vmatpush1.bf16.msra.mxu0 0
        %948 = vmatprep.subr.bf16.mxu0 0
        %949 = vmatpush1.bf16.msra.mxu0 0
        %950 = vmatprep.subr.bf16.mxu0 0
        %951 = vmatpush1.bf16.msra.mxu0 0
        %952 = vmatprep.subr.bf16.mxu0 0
        %953 = vmatpush1.bf16.msra.mxu0 0
        %954 = vmatprep.subr.bf16.mxu0 0
        %955 = vmatpush1.bf16.msra.mxu0 0
        %956 = vmatprep.subr.bf16.mxu0 0
        %957 = vmatpush1.bf16.msra.mxu0 0
        %958 = vmatprep.subr.bf16.mxu0 0
        %959 = vmatpush1.bf16.msra.mxu0 0
        %960 = vmatprep.subr.bf16.mxu0 0
        %961 = vmatpush1.bf16.msra.mxu0 0
        %962 = vmatprep.subr.bf16.mxu0 0
        %963 = vmatpush1.bf16.msra.mxu0 0
        %964 = vmatprep.subr.bf16.mxu0 0
        %965 = vmatpush1.bf16.msra.mxu0 0
        %966 = vmatprep.subr.bf16.mxu0 0
        %967 = vmatpush1.bf16.msra.mxu0 0
        %968 = vmatprep.subr.bf16.mxu0 0
        %969 = vmatpush1.bf16.msra.mxu0 0
        %970 = vmatprep.subr.bf16.mxu0 0
        %971 = vmatpush1.bf16.msra.mxu0 0
        %972 = vmatprep.subr.bf16.mxu0 0
        %973 = vmatpush1.bf16.msra.mxu0 0
        %974 = vmatprep.mubr.bf16.mxu0 0
        %975 = vmatmul.mubr.bf16.gmra.mrb[0].mxu0 %v940
        %v976 = vpop.f32.mrb[0].mxu0
        %v977 = vadd.f32 0.0, %v976
        %v978 = vpop.f32.mrb[0].mxu0
        %v979 = vpop.f32.mrb[0].mxu0
        %v980 = vpop.f32.mrb[0].mxu0
        %981 = vdwg.mxu0
        %v982 = vadd.f32 %v920, %v977
        %v983 = vxor.u32 %v982, 2147483648
        %v984 = vmul.f32 %v983, 1.442695
        %v985 = vpow.pop %v984
        %v986 = vadd.f32 %v985, 1.0
        %v987 = vrcp.pop %v986
        %v988 = vmul.f32 1.0, %v987
        %v989 = vtanh.pop %v982
        %v990 = vld [vmem:[#allocation3] sm:$0x3]
        %992 = vrot.lane.b32.xlu0 %v990, 32
        %v993 = vpop.permute.xlu0 %992
        %v995 = vmul.f32 %v988, %v993
        %997 = vrot.lane.b32.xlu0 %v989, 64
        %v998 = vpop.permute.xlu0 %997
        %v1000 = vmul.f32 %v988, %v998
        %1002 = vrot.lane.b32.xlu0 %v1000, 32
        %v1003 = vpop.permute.xlu0 %1002
        %v1005 = vadd.f32 %v995, %v1003
        %v1006 = vtanh.pop %v1005
        %1008 = vrot.lane.b32.xlu0 %v1006, 64
        %v1009 = vpop.permute.xlu0 %1008
        %v1011 = vmul.f32 %v988, %v1009
        %1013 = vrot.lane.b32.xlu0 %v1011, 32
        %v1014 = vpop.permute.xlu0 %1013
        %1016 = vst.msk [vmem:[#allocation2] sm:$0x3] %vm480, %v1014
        %1018 = vrot.lane.b32.xlu0 %v1005, 96
        %v1019 = vpop.permute.xlu0 %1018
        %1021 = vst.msk [vmem:[#allocation3] sm:$0x3] %vm480, %v1019
        %s1022 = scalar_lea.vmem %s345, %s918 [#allocation9]
        %1023 = vst.msk [vmem:[%s1022] sm:$0x3] %vm480, %v1014
        %s1024 = scalar_select %p379, 1, 6
        %s1025 = smul.u32 %s1024, 2
        %s1026 = scalar_lea.vmem %s299, %s1025 [#allocation4]
        %v1027 = vld [vmem:[%s1026] sm:$0x3]
        %v1028 = vld [vmem:[#allocation2] sm:$0x3]
        %v1029 = vpack.c.bf16 %v1028, %v1028
        %v1030 = vld [vmem:[%s308] sm:$0xf]
        %v1031 = vld [vmem:[%s308 + $0x4] sm:$0xf]
        %v1032 = vld [vmem:[%s308 + $0x8] sm:$0xf]
        %v1033 = vld [vmem:[%s308 + $0xc] sm:$0xf]
        %v1038 = vunpack.c.l.b16 %v1030
        %v1039 = vunpack.c.l.b16 %v1031
        %v1040 = vunpack.c.l.b16 %v1032
        %v1041 = vunpack.c.l.b16 %v1033
        %v1042 = vpack.c.b16 %v1039, %v1038
        %v1043 = vpack.c.b16 %v1041, %v1040
        %v1047 = vsel %vm402, %v1029, 0
        %1049 = vmatprep.subr.bf16.mxu0 0
        %1050 = vmatpush1.bf16.msra.mxu0 %v1042
        %1051 = vmatprep.subr.bf16.mxu0 0
        %1052 = vmatpush1.bf16.msra.mxu0 %v1043
        %1053 = vmatprep.subr.bf16.mxu0 0
        %1054 = vmatpush1.bf16.msra.mxu0 0
        %1055 = vmatprep.subr.bf16.mxu0 0
        %1056 = vmatpush1.bf16.msra.mxu0 0
        %1057 = vmatprep.subr.bf16.mxu0 0
        %1058 = vmatpush1.bf16.msra.mxu0 0
        %1059 = vmatprep.subr.bf16.mxu0 0
        %1060 = vmatpush1.bf16.msra.mxu0 0
        %1061 = vmatprep.subr.bf16.mxu0 0
        %1062 = vmatpush1.bf16.msra.mxu0 0
        %1063 = vmatprep.subr.bf16.mxu0 0
        %1064 = vmatpush1.bf16.msra.mxu0 0
        %1065 = vmatprep.subr.bf16.mxu0 0
        %1066 = vmatpush1.bf16.msra.mxu0 0
        %1067 = vmatprep.subr.bf16.mxu0 0
        %1068 = vmatpush1.bf16.msra.mxu0 0
        %1069 = vmatprep.subr.bf16.mxu0 0
        %1070 = vmatpush1.bf16.msra.mxu0 0
        %1071 = vmatprep.subr.bf16.mxu0 0
        %1072 = vmatpush1.bf16.msra.mxu0 0
        %1073 = vmatprep.subr.bf16.mxu0 0
        %1074 = vmatpush1.bf16.msra.mxu0 0
        %1075 = vmatprep.subr.bf16.mxu0 0
        %1076 = vmatpush1.bf16.msra.mxu0 0
        %1077 = vmatprep.subr.bf16.mxu0 0
        %1078 = vmatpush1.bf16.msra.mxu0 0
        %1079 = vmatprep.subr.bf16.mxu0 0
        %1080 = vmatpush1.bf16.msra.mxu0 0
        %1081 = vmatprep.mubr.bf16.mxu0 0
        %1082 = vmatmul.mubr.bf16.gmra.mrb[0].mxu0 %v1047
        %v1083 = vpop.f32.mrb[0].mxu0
        %v1084 = vadd.f32 0.0, %v1083
        %v1085 = vpop.f32.mrb[0].mxu0
        %v1086 = vpop.f32.mrb[0].mxu0
        %v1087 = vpop.f32.mrb[0].mxu0
        %1088 = vdwg.mxu0
        %v1089 = vadd.f32 %v1027, %v1084
        %v1090 = vxor.u32 %v1089, 2147483648
        %v1091 = vmul.f32 %v1090, 1.442695
        %v1092 = vpow.pop %v1091
        %v1093 = vadd.f32 %v1092, 1.0
        %v1094 = vrcp.pop %v1093
        %v1095 = vmul.f32 1.0, %v1094
        %v1096 = vtanh.pop %v1089
        %v1097 = vld [vmem:[#allocation3] sm:$0x3]
        %1099 = vrot.lane.b32.xlu0 %v1097, 32
        %v1100 = vpop.permute.xlu0 %1099
        %v1102 = vmul.f32 %v1095, %v1100
        %1104 = vrot.lane.b32.xlu0 %v1096, 64
        %v1105 = vpop.permute.xlu0 %1104
        %v1107 = vmul.f32 %v1095, %v1105
        %1109 = vrot.lane.b32.xlu0 %v1107, 32
        %v1110 = vpop.permute.xlu0 %1109
        %v1112 = vadd.f32 %v1102, %v1110
        %v1113 = vtanh.pop %v1112
        %1115 = vrot.lane.b32.xlu0 %v1113, 64
        %v1116 = vpop.permute.xlu0 %1115
        %v1118 = vmul.f32 %v1095, %v1116
        %1120 = vrot.lane.b32.xlu0 %v1118, 32
        %v1121 = vpop.permute.xlu0 %1120
        %1123 = vst.msk [vmem:[#allocation2] sm:$0x3] %vm480, %v1121
        %1125 = vrot.lane.b32.xlu0 %v1112, 96
        %v1126 = vpop.permute.xlu0 %1125
        %1128 = vst.msk [vmem:[#allocation3] sm:$0x3] %vm480, %v1126
        %s1129 = scalar_lea.vmem %s345, %s1025 [#allocation9]
        %1130 = vst.msk [vmem:[%s1129] sm:$0x3] %vm480, %v1121
        %s1131 = scalar_select %p379, 0, 7
        %s1132 = smul.u32 %s1131, 2
        %s1133 = scalar_lea.vmem %s299, %s1132 [#allocation4]
        %v1134 = vld [vmem:[%s1133] sm:$0x3]
        %v1135 = vld [vmem:[#allocation2] sm:$0x3]
        %v1136 = vpack.c.bf16 %v1135, %v1135
        %v1137 = vld [vmem:[%s308] sm:$0xf]
        %v1138 = vld [vmem:[%s308 + $0x4] sm:$0xf]
        %v1139 = vld [vmem:[%s308 + $0x8] sm:$0xf]
        %v1140 = vld [vmem:[%s308 + $0xc] sm:$0xf]
        %v1145 = vunpack.c.l.b16 %v1137
        %v1146 = vunpack.c.l.b16 %v1138
        %v1147 = vunpack.c.l.b16 %v1139
        %v1148 = vunpack.c.l.b16 %v1140
        %v1149 = vpack.c.b16 %v1146, %v1145
        %v1150 = vpack.c.b16 %v1148, %v1147
        %v1154 = vsel %vm402, %v1136, 0
        %1156 = vmatprep.subr.bf16.mxu0 0
        %1157 = vmatpush1.bf16.msra.mxu0 %v1149
        %1158 = vmatprep.subr.bf16.mxu0 0
        %1159 = vmatpush1.bf16.msra.mxu0 %v1150
        %1160 = vmatprep.subr.bf16.mxu0 0
        %1161 = vmatpush1.bf16.msra.mxu0 0
        %1162 = vmatprep.subr.bf16.mxu0 0
        %1163 = vmatpush1.bf16.msra.mxu0 0
        %1164 = vmatprep.subr.bf16.mxu0 0
        %1165 = vmatpush1.bf16.msra.mxu0 0
        %1166 = vmatprep.subr.bf16.mxu0 0
        %1167 = vmatpush1.bf16.msra.mxu0 0
        %1168 = vmatprep.subr.bf16.mxu0 0
        %1169 = vmatpush1.bf16.msra.mxu0 0
        %1170 = vmatprep.subr.bf16.mxu0 0
        %1171 = vmatpush1.bf16.msra.mxu0 0
        %1172 = vmatprep.subr.bf16.mxu0 0
        %1173 = vmatpush1.bf16.msra.mxu0 0
        %1174 = vmatprep.subr.bf16.mxu0 0
        %1175 = vmatpush1.bf16.msra.mxu0 0
        %1176 = vmatprep.subr.bf16.mxu0 0
        %1177 = vmatpush1.bf16.msra.mxu0 0
        %1178 = vmatprep.subr.bf16.mxu0 0
        %1179 = vmatpush1.bf16.msra.mxu0 0
        %1180 = vmatprep.subr.bf16.mxu0 0
        %1181 = vmatpush1.bf16.msra.mxu0 0
        %1182 = vmatprep.subr.bf16.mxu0 0
        %1183 = vmatpush1.bf16.msra.mxu0 0
        %1184 = vmatprep.subr.bf16.mxu0 0
        %1185 = vmatpush1.bf16.msra.mxu0 0
        %1186 = vmatprep.subr.bf16.mxu0 0
        %1187 = vmatpush1.bf16.msra.mxu0 0
        %1188 = vmatprep.mubr.bf16.mxu0 0
        %1189 = vmatmul.mubr.bf16.gmra.mrb[0].mxu0 %v1154
        %v1190 = vpop.f32.mrb[0].mxu0
        %v1191 = vadd.f32 0.0, %v1190
        %v1192 = vpop.f32.mrb[0].mxu0
        %v1193 = vpop.f32.mrb[0].mxu0
        %v1194 = vpop.f32.mrb[0].mxu0
        %1195 = vdwg.mxu0
        %v1196 = vadd.f32 %v1134, %v1191
        %v1197 = vxor.u32 %v1196, 2147483648
        %v1198 = vmul.f32 %v1197, 1.442695
        %v1199 = vpow.pop %v1198
        %v1200 = vadd.f32 %v1199, 1.0
        %v1201 = vrcp.pop %v1200
        %v1202 = vmul.f32 1.0, %v1201
        %v1203 = vtanh.pop %v1196
        %v1204 = vld [vmem:[#allocation3] sm:$0x3]
        %1206 = vrot.lane.b32.xlu0 %v1204, 32
        %v1207 = vpop.permute.xlu0 %1206
        %v1209 = vmul.f32 %v1202, %v1207
        %1211 = vrot.lane.b32.xlu0 %v1203, 64
        %v1212 = vpop.permute.xlu0 %1211
        %v1214 = vmul.f32 %v1202, %v1212
        %1216 = vrot.lane.b32.xlu0 %v1214, 32
        %v1217 = vpop.permute.xlu0 %1216
        %v1219 = vadd.f32 %v1209, %v1217
        %v1220 = vtanh.pop %v1219
        %1222 = vrot.lane.b32.xlu0 %v1220, 64
        %v1223 = vpop.permute.xlu0 %1222
        %v1225 = vmul.f32 %v1202, %v1223
        %1227 = vrot.lane.b32.xlu0 %v1225, 32
        %v1228 = vpop.permute.xlu0 %1227
        %1230 = vst.msk [vmem:[#allocation2] sm:$0x3] %vm480, %v1228
        %1232 = vrot.lane.b32.xlu0 %v1219, 96
        %v1233 = vpop.permute.xlu0 %1232
        %1235 = vst.msk [vmem:[#allocation3] sm:$0x3] %vm480, %v1233
        %s1236 = scalar_lea.vmem %s345, %s1132 [#allocation9]
        %1237 = vst.msk [vmem:[%s1236] sm:$0x3] %vm480, %v1228
        // Predicated region
        $region49: #{tpu_custom_call.1} parent=35 // pred_check
          %p1238 = pneg %p370
        $region50: #{tpu_custom_call.1} parent=35 // pred_check_branch
          %1240 = sbr.rel (%p1238) target = $region52
        $region51: #{tpu_custom_call.1} parent=35 // pred_region
          %v1241 = vld [vmem:[#allocation3] sm:$0x3]
          %1242 = vst.msk [vmem:[%s352] sm:$0x3] %vm480, %v1241
        $region52: #{tpu_custom_call.1} parent=35 // pred_fallthru
          _
        %s1243 = sand.u32 %s169, 1
        %s1244 = scalar_lea.sflag [#allocation6], %s1243
        %s1245 = sand.u32 %s169, 1
        %s1246 = smul.addr %s1245, 16
        %s1247 = scalar_lea.vmem [#allocation9], %s1246
        %s1248 = sand.u32 %s195, 1
        %s1249 = scalar_lea.sflag [#allocation11], %s1248
        %s1250 = sand.u32 %s195, 1
        %s1251 = smul.addr %s1250, 2
        %s1252 = scalar_lea.vmem [#allocation10], %s1251
        // Predicated region
        $region53: #{tpu_custom_call.1} parent=35 // pred_check
          %p1253 = pneg %p179
        $region54: #{tpu_custom_call.1} parent=35 // pred_check_branch
          %1255 = sbr.rel (%p1253) target = $region56
        $region55: #{tpu_custom_call.1} parent=35 // pred_region
          %s1256 = smul.u32 %s33, 2
          %s1257 = ssub.s32 1, %s1256
          %s1258 = smul.u32 %s1257, %s34
          %s1259 = smul.u32 8, %s1258
          %s1261 = ssub.s32 256, 256
          %1262 = vsyncadd %s1244, %s1261
          %s1263 = smul.addr %s33, 8
          %s1264 = sadd.s32 %s1259, %s1263
          %s1265 = smul.addr %s1264, 32
          %s1266 = scalar_lea.hbm %s4, %s1265
          %s1267 = sshll.u32 %s1247, 4
          %s1268 = int_to_ptr.vmem [resolvable:$true] %s1267
          %1273 = dma.vmem_to_hbm [thread:$0]  %s1268, 256, %s1266, %s1244, 32, 32, 2
        $region56: #{tpu_custom_call.1} parent=35 // pred_fallthru
          _
        // Predicated region
        $region57: #{tpu_custom_call.1} parent=35 // pred_check
          %p1274 = pneg %p205
        $region58: #{tpu_custom_call.1} parent=35 // pred_check_branch
          %1276 = sbr.rel (%p1274) target = $region60
        $region59: #{tpu_custom_call.1} parent=35 // pred_region
          %s1278 = ssub.s32 32, 32
          %1279 = vsyncadd %s1249, %s1278
          %s1280 = smul.addr %s33, 32
          %s1281 = scalar_lea.hbm %s5, %s1280
          %s1283 = sshll.u32 %s1252, 4
          %s1284 = int_to_ptr.vmem [resolvable:$true] %s1283
          %1286 = dma.vmem_to_hbm [thread:$0]  %s1284, 32, %s1281, %s1249
        $region60: #{tpu_custom_call.1} parent=35 // pred_fallthru
          _
      $region36: #{tpu_custom_call.1} parent=5 // pred_fallthru
        _
      %p1287 = scmp.le.s32.totalorder 2, %s24
      // Predicated region
      $region61: #{tpu_custom_call.1} parent=5 // pred_check
        %p1288 = pneg %p1287
      $region62: #{tpu_custom_call.1} parent=5 // pred_check_branch
        %1290 = sbr.rel (%p1288) target = $region64
      $region63: #{tpu_custom_call.1} parent=5 // pred_region
        %s1291 = ssub.s32 %s24, 2
        // Predicated region
        $region65: #{tpu_custom_call.1} parent=63 // pred_check
          %p1292 = pneg %p185
        $region66: #{tpu_custom_call.1} parent=63 // pred_check_branch
          %1294 = sbr.rel (%p1292) target = $region68
        $region67: #{tpu_custom_call.1} parent=63 // pred_region
          %s1295 = sand.u32 %s170, 1
          %s1296 = scalar_lea.sflag [#allocation6], %s1295
          %s1297 = sand.u32 %s170, 1
          %s1298 = smul.addr %s1297, 16
          %s1299 = scalar_lea.vmem [#allocation9], %s1298
          %1300 = dma.done %s1296, 256
        $region68: #{tpu_custom_call.1} parent=63 // pred_fallthru
          _
        // Predicated region
        $region69: #{tpu_custom_call.1} parent=63 // pred_check
          %p1301 = pneg %p211
        $region70: #{tpu_custom_call.1} parent=63 // pred_check_branch
          %1303 = sbr.rel (%p1301) target = $region72
        $region71: #{tpu_custom_call.1} parent=63 // pred_region
          %s1304 = sand.u32 %s196, 1
          %s1305 = scalar_lea.sflag [#allocation11], %s1304
          %s1306 = sand.u32 %s196, 1
          %s1307 = smul.addr %s1306, 2
          %s1308 = scalar_lea.vmem [#allocation10], %s1307
          %1309 = dma.done %s1305, 32
        $region72: #{tpu_custom_call.1} parent=63 // pred_fallthru
          _
      $region64: #{tpu_custom_call.1} parent=5 // pred_fallthru
        _
    $region6: #{tpu_custom_call.1} parent=1 // loop_footer
      %s28 = sadd.s32 1, %s24
    $region7: #{tpu_custom_call.1} parent=1 // loop_footer_branch
      %23 = sbr.rel target = $region3
    $region8: #{tpu_custom_call.1} parent=1 // loop_exit
      _
    %1310 = vsyncpa [#allocation5], 1
    %s1311 = scalar_lea.sflag [#allocation5], 1
    %1312 = vsyncpa %s1311, 1
    %1313 = vsyncpa [#allocation8], 1
    %s1314 = scalar_lea.sflag [#allocation8], 1
    %1315 = vsyncpa %s1314, 1
    %1316 = vsyncpa [#allocation6], 1
    %s1317 = scalar_lea.sflag [#allocation6], 1
    %1318 = vsyncpa %s1317, 1
    %1319 = vsyncpa [#allocation11], 1
    %s1320 = scalar_lea.sflag [#allocation11], 1
    %1321 = vsyncpa %s1320, 1

</llo_original>
